<compile_context>
chip_gen: v7x
topology: tpu7x:2x2x1
jax: 0.10.0
libtpu: 0.0.40
codegen_flags: <defaults>
</compile_context>

<pallas_src>
import jax
import jax.numpy as jnp
import numpy as np
from jax.experimental import pallas as pl
from jax.experimental.pallas import tpu as pltpu

BN_EPS = 1e-5
_HIGHEST = jax.lax.Precision.HIGHEST


def _cam_attn_conv_kernel(x1_ref, x2_ref, w_ref, gamma_ref, beta_ref,
                          conv_ref, scale_ref, shift_ref,
                          sum_scr, sqsum_scr):
    # x1_ref: (1, c, hw)   x2_ref: (1, hw, c)   w_ref: (c, c)
    # gamma_ref/beta_ref: (c, 1)   conv_ref: (1, c, hw) f32
    # scale_ref/shift_ref: (c, 1) f32   scratch: (c, 1) f32 each
    i = pl.program_id(0)
    nb = pl.num_programs(0)

    @pl.when(i == 0)
    def _():
        sum_scr[...] = jnp.zeros_like(sum_scr)
        sqsum_scr[...] = jnp.zeros_like(sqsum_scr)

    x1 = x1_ref[0]                                                  # (c, hw)
    x2 = x2_ref[0]                                                  # (hw, c)

    s = jnp.dot(x1, x2, preferred_element_type=jnp.float32,
                precision=_HIGHEST)                                  # (c, c) logits
    s = s - jnp.max(s, axis=-1, keepdims=True)
    e = jnp.exp(s)
    denom = jnp.sum(e, axis=-1, keepdims=True)                       # (c, 1)
    attn = e / denom                                                 # softmax(dim=-1), exact

    # 1x1 conv fused into the attention:  W @ (attn @ x1) == (W @ attn) @ x1
    m = jnp.dot(w_ref[...].astype(jnp.float32), attn,
                preferred_element_type=jnp.float32, precision=_HIGHEST)   # (c, c)
    conv = jnp.dot(m, x1.astype(jnp.float32),
                   preferred_element_type=jnp.float32, precision=_HIGHEST)  # (c, hw)
    conv_ref[0] = conv

    # Streaming BatchNorm statistics (per output channel, over batch x spatial).
    sum_scr[...] += jnp.sum(conv, axis=1, keepdims=True)
    sqsum_scr[...] += jnp.sum(conv * conv, axis=1, keepdims=True)

    @pl.when(i == nb - 1)
    def _():
        count = nb * x1_ref.shape[2]                                 # b * hw
        mean = sum_scr[...] / count
        var = sqsum_scr[...] / count - mean * mean                   # biased variance
        inv = jax.lax.rsqrt(var + BN_EPS)
        g = gamma_ref[...] * inv                                     # (c, 1)
        scale_ref[...] = g
        shift_ref[...] = beta_ref[...] - mean * g


def _cam_bn_residual_kernel(conv_ref, x_ref, scale_ref, shift_ref, o_ref):
    # conv_ref: (1, c, hw) f32   x_ref/o_ref: (1, c, hw)   scale/shift: (c, 1) f32
    conv = conv_ref[0]
    xb = x_ref[0].astype(jnp.float32)
    o_ref[0] = (conv * scale_ref[...] + shift_ref[...] + xb).astype(o_ref.dtype)


def _vmem_limit_bytes(*block_bytes):
    # double-buffered blocks + headroom, clamped to stay v7x/v5e-safe.
    need = 2 * sum(int(b) for b in block_bytes) + (1 << 20)
    return int(min(max(2 * need, 8 << 20), 64 << 20))


@jax.jit
def cam_forward(x, conv_w, gamma, beta):
    b, c, h, w = x.shape
    hw = h * w
    x1 = x.reshape(b, c, hw)          # == inputs.view(b, c, -1)
    x2 = x.reshape(b, hw, c)          # == inputs.view(b, -1, c): same bytes (bitcast)
    gamma2 = gamma.reshape(c, 1).astype(jnp.float32)
    beta2 = beta.reshape(c, 1).astype(jnp.float32)

    itm = x.dtype.itemsize
    vmem1 = _vmem_limit_bytes(c * hw * itm, hw * max(c, 128) * itm, c * hw * 4)
    conv, scale, shift = pl.pallas_call(
        _cam_attn_conv_kernel,
        out_shape=(
            jax.ShapeDtypeStruct((b, c, hw), jnp.float32),   # conv (BN staging, f32)
            jax.ShapeDtypeStruct((c, 1), jnp.float32),       # per-channel BN scale
            jax.ShapeDtypeStruct((c, 1), jnp.float32),       # per-channel BN shift
        ),
        grid=(b,),
        in_specs=[
            pl.BlockSpec((1, c, hw), lambda i: (i, 0, 0)),
            pl.BlockSpec((1, hw, c), lambda i: (i, 0, 0)),
            pl.BlockSpec((c, c), lambda i: (0, 0)),
            pl.BlockSpec((c, 1), lambda i: (0, 0)),
            pl.BlockSpec((c, 1), lambda i: (0, 0)),
        ],
        out_specs=(
            pl.BlockSpec((1, c, hw), lambda i: (i, 0, 0)),
            pl.BlockSpec((c, 1), lambda i: (0, 0)),
            pl.BlockSpec((c, 1), lambda i: (0, 0)),
        ),
        scratch_shapes=[pltpu.VMEM((c, 1), jnp.float32),
                        pltpu.VMEM((c, 1), jnp.float32)],
        compiler_params=pltpu.CompilerParams(
            dimension_semantics=("arbitrary",),   # cross-batch BN stat accumulation
            vmem_limit_bytes=vmem1,
        ),
    )(x1, x2, conv_w, gamma2, beta2)

    vmem2 = _vmem_limit_bytes(c * hw * 4, c * hw * itm, c * hw * itm)
    out_flat = pl.pallas_call(
        _cam_bn_residual_kernel,
        out_shape=jax.ShapeDtypeStruct((b, c, hw), x.dtype),
        grid=(b,),
        in_specs=[
            pl.BlockSpec((1, c, hw), lambda i: (i, 0, 0)),
            pl.BlockSpec((1, c, hw), lambda i: (i, 0, 0)),
            pl.BlockSpec((c, 1), lambda i: (0, 0)),
            pl.BlockSpec((c, 1), lambda i: (0, 0)),
        ],
        out_specs=pl.BlockSpec((1, c, hw), lambda i: (i, 0, 0)),
        compiler_params=pltpu.CompilerParams(
            dimension_semantics=("parallel",),    # purely elementwise per batch
            vmem_limit_bytes=vmem2,
        ),
    )(conv, x1, scale, shift)
    return out_flat.reshape(b, c, h, w)


def cam_reference(x, conv_w, gamma, beta):
    """Pure-JAX reference mirroring the PyTorch forward (training-mode BN)."""
    b, c, h, w = x.shape
    hw = h * w
    net1 = x.reshape(b, c, hw)
    net2 = x.reshape(b, hw, c)
    resp = jnp.einsum('bij,bjk->bik', net1, net2, precision=_HIGHEST)
    resp = jax.nn.softmax(resp, axis=-1)
    res = jnp.einsum('bij,bjk->bik', resp, net1, precision=_HIGHEST)
    res = res.reshape(b, c, h, w)
    conv = jnp.einsum('oc,bchw->bohw', conv_w, res, precision=_HIGHEST)
    mean = jnp.mean(conv, axis=(0, 2, 3), keepdims=True)
    var = jnp.mean((conv - mean) ** 2, axis=(0, 2, 3), keepdims=True)
    bn = (conv - mean) * jax.lax.rsqrt(var + BN_EPS)
    bn = bn * gamma[None, :, None, None] + beta[None, :, None, None]
    return bn + x


if __name__ == "__main__":
    key = jax.random.PRNGKey(0)
    k1, k2, k3, k4 = jax.random.split(key, 4)

    b, c, h, w = 2, 8, 16, 16
    # Modest scale keeps the softmax logits well-conditioned for the f32 check.
    x = 0.25 * jax.random.normal(k1, (b, c, h, w), dtype=jnp.float32)
    # conv1 weight: (c, c, 1, 1) in PyTorch -> stored squeezed as (c, c).
    conv_w = 0.1 * jax.random.normal(k2, (c, c), dtype=jnp.float32)
    # BatchNorm affine params (PyTorch inits gamma=1, beta=0; perturb a bit).
    gamma = 1.0 + 0.1 * jax.random.normal(k3, (c,), dtype=jnp.float32)
    beta = 0.1 * jax.random.normal(k4, (c,), dtype=jnp.float32)

    out = cam_forward(x, conv_w, gamma, beta)
    out = jax.block_until_ready(out)

    ref = cam_reference(x, conv_w, gamma, beta)
    np.testing.assert_allclose(np.asarray(out), np.asarray(ref),
                               rtol=5e-3, atol=5e-3)
    print("KERNEL_OK")
</pallas_src>

<mosaic_0001>
module attributes {stable_mosaic.version = 11 : i64} {
  func.func @_cam_attn_conv_kernel(%arg0: i32, %arg1: memref<1x8x256xf32, #tpu.memory_space<vmem>>, %arg2: memref<1x256x8xf32, #tpu.memory_space<vmem>>, %arg3: memref<8x8xf32, #tpu.memory_space<vmem>>, %arg4: memref<8x1xf32, #tpu.memory_space<vmem>>, %arg5: memref<8x1xf32, #tpu.memory_space<vmem>>, %arg6: memref<1x8x256xf32, #tpu.memory_space<vmem>>, %arg7: memref<8x1xf32, #tpu.memory_space<vmem>>, %arg8: memref<8x1xf32, #tpu.memory_space<vmem>>, %arg9: memref<8x1xf32, #tpu.memory_space<vmem>>, %arg10: memref<8x1xf32, #tpu.memory_space<vmem>>) attributes {dimension_semantics = [#tpu.dimension_semantics<arbitrary>], iteration_bounds = array<i64: 2>, scalar_prefetch = 0 : i64, scratch_operands = 2 : i64, tpu.core_type = #tpu.core_type<tc>, window_params = [{transform_indices = @transform_0, window_bounds = array<i64: 1, 8, 256>}, {transform_indices = @transform_1, window_bounds = array<i64: 1, 256, 8>}, {pipeline_mode = #tpu.pipeline_mode<synchronous>, transform_indices = @transform_2, window_bounds = array<i64: 8, 8>}, {pipeline_mode = #tpu.pipeline_mode<synchronous>, transform_indices = @transform_3, window_bounds = array<i64: 8, 1>}, {pipeline_mode = #tpu.pipeline_mode<synchronous>, transform_indices = @transform_4, window_bounds = array<i64: 8, 1>}, {transform_indices = @transform_5, window_bounds = array<i64: 1, 8, 256>}, {pipeline_mode = #tpu.pipeline_mode<synchronous>, transform_indices = @transform_6, window_bounds = array<i64: 8, 1>}, {pipeline_mode = #tpu.pipeline_mode<synchronous>, transform_indices = @transform_7, window_bounds = array<i64: 8, 1>}]} {
    %c0_i32 = arith.constant 0 : i32
    %0 = arith.cmpi eq, %arg0, %c0_i32 : i32
    %1 = arith.extui %0 : i1 to i32
    %c0_i32_0 = arith.constant 0 : i32
    %2 = arith.cmpi ne, %1, %c0_i32_0 : i32
    scf.if %2 {
      %cst_26 = arith.constant 0.000000e+00 : f32
      %37 = vector.broadcast %cst_26 : f32 to vector<8x1xf32>
      %c0_27 = arith.constant 0 : index
      %c0_28 = arith.constant 0 : index
      %38 = vector.load %arg9[%c0_27, %c0_28] : memref<8x1xf32, #tpu.memory_space<vmem>>, vector<8x1xf32>
      tpu.vector_store %arg9[%c0_27, %c0_28], %37 {strides = array<i32>} : memref<8x1xf32, #tpu.memory_space<vmem>>, vector<8x1xf32>,
      %cst_29 = arith.constant 0.000000e+00 : f32
      %39 = vector.broadcast %cst_29 : f32 to vector<8x1xf32>
      %c0_30 = arith.constant 0 : index
      %c0_31 = arith.constant 0 : index
      %40 = vector.load %arg10[%c0_30, %c0_31] : memref<8x1xf32, #tpu.memory_space<vmem>>, vector<8x1xf32>
      tpu.vector_store %arg10[%c0_30, %c0_31], %39 {strides = array<i32>} : memref<8x1xf32, #tpu.memory_space<vmem>>, vector<8x1xf32>,
    } else {
    }
    %c0 = arith.constant 0 : index
    %c0_1 = arith.constant 0 : index
    %c0_2 = arith.constant 0 : index
    %3 = vector.load %arg1[%c0, %c0_1, %c0_2] : memref<1x8x256xf32, #tpu.memory_space<vmem>>, vector<1x8x256xf32>
    %4 = vector.shape_cast %3 : vector<1x8x256xf32> to vector<8x256xf32>
    %c0_3 = arith.constant 0 : index
    %c0_4 = arith.constant 0 : index
    %c0_5 = arith.constant 0 : index
    %5 = vector.load %arg2[%c0_3, %c0_4, %c0_5] : memref<1x256x8xf32, #tpu.memory_space<vmem>>, vector<1x256x8xf32>
    %6 = vector.shape_cast %5 : vector<1x256x8xf32> to vector<256x8xf32>
    %cst = arith.constant dense<0.000000e+00> : vector<8x8xf32>
    %7 = tpu.matmul %4, %6, %cst {dimension_numbers = #tpu.dot_dimension_numbers<[1], [0], [0], [1], [0, 0, 1, 1], [], []>, precision = #tpu.contract_precision<fp32>} : vector<8x256xf32>, vector<256x8xf32>, vector<8x8xf32> -> vector<8x8xf32>
    %cst_6 = arith.constant dense<0xFF800000> : vector<8xf32>
    %8 = vector.multi_reduction <maximumf>, %7, %cst_6 [1] : vector<8x8xf32> to vector<8xf32>
    %9 = vector.shape_cast %8 : vector<8xf32> to vector<8x1xf32>
    %10 = vector.broadcast %9 : vector<8x1xf32> to vector<8x8xf32>
    %11 = arith.subf %7, %10 : vector<8x8xf32>
    %12 = math.exp %11 : vector<8x8xf32>
    %cst_7 = arith.constant dense<0.000000e+00> : vector<8xf32>
    %13 = vector.multi_reduction <add>, %12, %cst_7 [1] : vector<8x8xf32> to vector<8xf32>
    %14 = vector.shape_cast %13 : vector<8xf32> to vector<8x1xf32>
    %15 = vector.broadcast %14 : vector<8x1xf32> to vector<8x8xf32>
    %16 = arith.divf %12, %15 : vector<8x8xf32>
    %c0_8 = arith.constant 0 : index
    %c0_9 = arith.constant 0 : index
    %17 = vector.load %arg3[%c0_8, %c0_9] : memref<8x8xf32, #tpu.memory_space<vmem>>, vector<8x8xf32>
    %cst_10 = arith.constant dense<0.000000e+00> : vector<8x8xf32>
    %18 = tpu.matmul %17, %16, %cst_10 {dimension_numbers = #tpu.dot_dimension_numbers<[1], [0], [0], [1], [0, 0, 1, 1], [], []>, precision = #tpu.contract_precision<fp32>} : vector<8x8xf32>, vector<8x8xf32>, vector<8x8xf32> -> vector<8x8xf32>
    %cst_11 = arith.constant dense<0.000000e+00> : vector<8x256xf32>
    %19 = tpu.matmul %18, %4, %cst_11 {dimension_numbers = #tpu.dot_dimension_numbers<[1], [0], [0], [1], [0, 0, 1, 1], [], []>, precision = #tpu.contract_precision<fp32>} : vector<8x8xf32>, vector<8x256xf32>, vector<8x256xf32> -> vector<8x256xf32>
    %c0_12 = arith.constant 0 : index
    %c0_13 = arith.constant 0 : index
    %c0_14 = arith.constant 0 : index
    %20 = vector.load %arg6[%c0_12, %c0_13, %c0_14] : memref<1x8x256xf32, #tpu.memory_space<vmem>>, vector<1x8x256xf32>
    %21 = vector.shape_cast %20 : vector<1x8x256xf32> to vector<8x256xf32>
    %22 = vector.shape_cast %19 : vector<8x256xf32> to vector<1x8x256xf32>
    tpu.vector_store %arg6[%c0_12, %c0_13, %c0_14], %22 {strides = array<i32>} : memref<1x8x256xf32, #tpu.memory_space<vmem>>, vector<1x8x256xf32>,
    %c0_15 = arith.constant 0 : index
    %c0_16 = arith.constant 0 : index
    %23 = vector.load %arg9[%c0_15, %c0_16] : memref<8x1xf32, #tpu.memory_space<vmem>>, vector<8x1xf32>
    %cst_17 = arith.constant dense<0.000000e+00> : vector<8xf32>
    %24 = vector.multi_reduction <add>, %19, %cst_17 [1] : vector<8x256xf32> to vector<8xf32>
    %25 = vector.shape_cast %24 : vector<8xf32> to vector<8x1xf32>
    %26 = arith.addf %23, %25 : vector<8x1xf32>
    %c0_18 = arith.constant 0 : index
    %c0_19 = arith.constant 0 : index
    %27 = vector.load %arg9[%c0_18, %c0_19] : memref<8x1xf32, #tpu.memory_space<vmem>>, vector<8x1xf32>
    tpu.vector_store %arg9[%c0_18, %c0_19], %26 {strides = array<i32>} : memref<8x1xf32, #tpu.memory_space<vmem>>, vector<8x1xf32>,
    %c0_20 = arith.constant 0 : index
    %c0_21 = arith.constant 0 : index
    %28 = vector.load %arg10[%c0_20, %c0_21] : memref<8x1xf32, #tpu.memory_space<vmem>>, vector<8x1xf32>
    %29 = arith.mulf %19, %19 : vector<8x256xf32>
    %cst_22 = arith.constant dense<0.000000e+00> : vector<8xf32>
    %30 = vector.multi_reduction <add>, %29, %cst_22 [1] : vector<8x256xf32> to vector<8xf32>
    %31 = vector.shape_cast %30 : vector<8xf32> to vector<8x1xf32>
    %32 = arith.addf %28, %31 : vector<8x1xf32>
    %c0_23 = arith.constant 0 : index
    %c0_24 = arith.constant 0 : index
    %33 = vector.load %arg10[%c0_23, %c0_24] : memref<8x1xf32, #tpu.memory_space<vmem>>, vector<8x1xf32>
    tpu.vector_store %arg10[%c0_23, %c0_24], %32 {strides = array<i32>} : memref<8x1xf32, #tpu.memory_space<vmem>>, vector<8x1xf32>,
    %c1_i32 = arith.constant 1 : i32
    %34 = arith.cmpi eq, %arg0, %c1_i32 : i32
    %35 = arith.extui %34 : i1 to i32
    %c0_i32_25 = arith.constant 0 : i32
    %36 = arith.cmpi ne, %35, %c0_i32_25 : i32
    scf.if %36 {
      %c0_26 = arith.constant 0 : index
      %c0_27 = arith.constant 0 : index
      %37 = vector.load %arg9[%c0_26, %c0_27] : memref<8x1xf32, #tpu.memory_space<vmem>>, vector<8x1xf32>
      %cst_28 = arith.constant 5.120000e+02 : f32
      %38 = vector.broadcast %cst_28 : f32 to vector<8x1xf32>
      %39 = arith.divf %37, %38 : vector<8x1xf32>
      %c0_29 = arith.constant 0 : index
      %c0_30 = arith.constant 0 : index
      %40 = vector.load %arg10[%c0_29, %c0_30] : memref<8x1xf32, #tpu.memory_space<vmem>>, vector<8x1xf32>
      %cst_31 = arith.constant 5.120000e+02 : f32
      %41 = vector.broadcast %cst_31 : f32 to vector<8x1xf32>
      %42 = arith.divf %40, %41 : vector<8x1xf32>
      %43 = arith.mulf %39, %39 : vector<8x1xf32>
      %44 = arith.subf %42, %43 : vector<8x1xf32>
      %cst_32 = arith.constant 9.99999974E-6 : f32
      %45 = vector.broadcast %cst_32 : f32 to vector<8x1xf32>
      %46 = arith.addf %44, %45 : vector<8x1xf32>
      %47 = math.rsqrt %46 : vector<8x1xf32>
      %c0_33 = arith.constant 0 : index
      %c0_34 = arith.constant 0 : index
      %48 = vector.load %arg4[%c0_33, %c0_34] : memref<8x1xf32, #tpu.memory_space<vmem>>, vector<8x1xf32>
      %49 = arith.mulf %48, %47 : vector<8x1xf32>
      %c0_35 = arith.constant 0 : index
      %c0_36 = arith.constant 0 : index
      %50 = vector.load %arg7[%c0_35, %c0_36] : memref<8x1xf32, #tpu.memory_space<vmem>>, vector<8x1xf32>
      tpu.vector_store %arg7[%c0_35, %c0_36], %49 {strides = array<i32>} : memref<8x1xf32, #tpu.memory_space<vmem>>, vector<8x1xf32>,
      %c0_37 = arith.constant 0 : index
      %c0_38 = arith.constant 0 : index
      %51 = vector.load %arg5[%c0_37, %c0_38] : memref<8x1xf32, #tpu.memory_space<vmem>>, vector<8x1xf32>
      %52 = arith.mulf %39, %49 : vector<8x1xf32>
      %53 = arith.subf %51, %52 : vector<8x1xf32>
      %c0_39 = arith.constant 0 : index
      %c0_40 = arith.constant 0 : index
      %54 = vector.load %arg8[%c0_39, %c0_40] : memref<8x1xf32, #tpu.memory_space<vmem>>, vector<8x1xf32>
      tpu.vector_store %arg8[%c0_39, %c0_40], %53 {strides = array<i32>} : memref<8x1xf32, #tpu.memory_space<vmem>>, vector<8x1xf32>,
    } else {
    }
    return
  }
  func.func @transform_0(%arg0: i32) -> (i32, i32, i32) {
    %c0_i32 = arith.constant 0 : i32
    %c0_i32_0 = arith.constant 0 : i32
    %c0_i32_1 = arith.constant 0 : i32
    return %arg0, %c0_i32, %c0_i32_0 : i32, i32, i32
  }
  func.func @transform_1(%arg0: i32) -> (i32, i32, i32) {
    %c0_i32 = arith.constant 0 : i32
    %c0_i32_0 = arith.constant 0 : i32
    %c0_i32_1 = arith.constant 0 : i32
    return %arg0, %c0_i32, %c0_i32_0 : i32, i32, i32
  }
  func.func @transform_2(%arg0: i32) -> (i32, i32) {
    %c0_i32 = arith.constant 0 : i32
    %c0_i32_0 = arith.constant 0 : i32
    %c0_i32_1 = arith.constant 0 : i32
    return %c0_i32, %c0_i32_0 : i32, i32
  }
  func.func @transform_3(%arg0: i32) -> (i32, i32) {
    %c0_i32 = arith.constant 0 : i32
    %c0_i32_0 = arith.constant 0 : i32
    %c0_i32_1 = arith.constant 0 : i32
    return %c0_i32, %c0_i32_0 : i32, i32
  }
  func.func @transform_4(%arg0: i32) -> (i32, i32) {
    %c0_i32 = arith.constant 0 : i32
    %c0_i32_0 = arith.constant 0 : i32
    %c0_i32_1 = arith.constant 0 : i32
    return %c0_i32, %c0_i32_0 : i32, i32
  }
  func.func @transform_5(%arg0: i32) -> (i32, i32, i32) {
    %c0_i32 = arith.constant 0 : i32
    %c0_i32_0 = arith.constant 0 : i32
    %c0_i32_1 = arith.constant 0 : i32
    return %arg0, %c0_i32, %c0_i32_0 : i32, i32, i32
  }
  func.func @transform_6(%arg0: i32) -> (i32, i32) {
    %c0_i32 = arith.constant 0 : i32
    %c0_i32_0 = arith.constant 0 : i32
    %c0_i32_1 = arith.constant 0 : i32
    return %c0_i32, %c0_i32_0 : i32, i32
  }
  func.func @transform_7(%arg0: i32) -> (i32, i32) {
    %c0_i32 = arith.constant 0 : i32
    %c0_i32_0 = arith.constant 0 : i32
    %c0_i32_1 = arith.constant 0 : i32
    return %c0_i32, %c0_i32_0 : i32, i32
  }
}

module attributes {stable_mosaic.version = 11 : i64} {
  func.func @_cam_bn_residual_kernel(%arg0: i32, %arg1: memref<1x8x256xf32, #tpu.memory_space<vmem>>, %arg2: memref<1x8x256xf32, #tpu.memory_space<vmem>>, %arg3: memref<8x1xf32, #tpu.memory_space<vmem>>, %arg4: memref<8x1xf32, #tpu.memory_space<vmem>>, %arg5: memref<1x8x256xf32, #tpu.memory_space<vmem>>) attributes {dimension_semantics = [#tpu.dimension_semantics<parallel>], iteration_bounds = array<i64: 2>, scalar_prefetch = 0 : i64, scratch_operands = 0 : i64, tpu.core_type = #tpu.core_type<tc>, window_params = [{transform_indices = @transform_0, window_bounds = array<i64: 1, 8, 256>}, {transform_indices = @transform_1, window_bounds = array<i64: 1, 8, 256>}, {pipeline_mode = #tpu.pipeline_mode<synchronous>, transform_indices = @transform_2, window_bounds = array<i64: 8, 1>}, {pipeline_mode = #tpu.pipeline_mode<synchronous>, transform_indices = @transform_3, window_bounds = array<i64: 8, 1>}, {transform_indices = @transform_4, window_bounds = array<i64: 1, 8, 256>}]} {
    %c0 = arith.constant 0 : index
    %c0_0 = arith.constant 0 : index
    %c0_1 = arith.constant 0 : index
    %0 = vector.load %arg1[%c0, %c0_0, %c0_1] : memref<1x8x256xf32, #tpu.memory_space<vmem>>, vector<1x8x256xf32>
    %1 = vector.shape_cast %0 : vector<1x8x256xf32> to vector<8x256xf32>
    %c0_2 = arith.constant 0 : index
    %c0_3 = arith.constant 0 : index
    %c0_4 = arith.constant 0 : index
    %2 = vector.load %arg2[%c0_2, %c0_3, %c0_4] : memref<1x8x256xf32, #tpu.memory_space<vmem>>, vector<1x8x256xf32>
    %3 = vector.shape_cast %2 : vector<1x8x256xf32> to vector<8x256xf32>
    %c0_5 = arith.constant 0 : index
    %c0_6 = arith.constant 0 : index
    %4 = vector.load %arg3[%c0_5, %c0_6] : memref<8x1xf32, #tpu.memory_space<vmem>>, vector<8x1xf32>
    %5 = vector.broadcast %4 : vector<8x1xf32> to vector<8x256xf32>
    %6 = arith.mulf %1, %5 : vector<8x256xf32>
    %c0_7 = arith.constant 0 : index
    %c0_8 = arith.constant 0 : index
    %7 = vector.load %arg4[%c0_7, %c0_8] : memref<8x1xf32, #tpu.memory_space<vmem>>, vector<8x1xf32>
    %8 = vector.broadcast %7 : vector<8x1xf32> to vector<8x256xf32>
    %9 = arith.addf %6, %8 : vector<8x256xf32>
    %10 = arith.addf %9, %3 : vector<8x256xf32>
    %c0_9 = arith.constant 0 : index
    %c0_10 = arith.constant 0 : index
    %c0_11 = arith.constant 0 : index
    %11 = vector.load %arg5[%c0_9, %c0_10, %c0_11] : memref<1x8x256xf32, #tpu.memory_space<vmem>>, vector<1x8x256xf32>
    %12 = vector.shape_cast %11 : vector<1x8x256xf32> to vector<8x256xf32>
    %13 = vector.shape_cast %10 : vector<8x256xf32> to vector<1x8x256xf32>
    tpu.vector_store %arg5[%c0_9, %c0_10, %c0_11], %13 {strides = array<i32>} : memref<1x8x256xf32, #tpu.memory_space<vmem>>, vector<1x8x256xf32>,
    return
  }
  func.func @transform_0(%arg0: i32) -> (i32, i32, i32) {
    %c0_i32 = arith.constant 0 : i32
    %c0_i32_0 = arith.constant 0 : i32
    %c0_i32_1 = arith.constant 0 : i32
    return %arg0, %c0_i32, %c0_i32_0 : i32, i32, i32
  }
  func.func @transform_1(%arg0: i32) -> (i32, i32, i32) {
    %c0_i32 = arith.constant 0 : i32
    %c0_i32_0 = arith.constant 0 : i32
    %c0_i32_1 = arith.constant 0 : i32
    return %arg0, %c0_i32, %c0_i32_0 : i32, i32, i32
  }
  func.func @transform_2(%arg0: i32) -> (i32, i32) {
    %c0_i32 = arith.constant 0 : i32
    %c0_i32_0 = arith.constant 0 : i32
    %c0_i32_1 = arith.constant 0 : i32
    return %c0_i32, %c0_i32_0 : i32, i32
  }
  func.func @transform_3(%arg0: i32) -> (i32, i32) {
    %c0_i32 = arith.constant 0 : i32
    %c0_i32_0 = arith.constant 0 : i32
    %c0_i32_1 = arith.constant 0 : i32
    return %c0_i32, %c0_i32_0 : i32, i32
  }
  func.func @transform_4(%arg0: i32) -> (i32, i32, i32) {
    %c0_i32 = arith.constant 0 : i32
    %c0_i32_0 = arith.constant 0 : i32
    %c0_i32_1 = arith.constant 0 : i32
    return %arg0, %c0_i32, %c0_i32_0 : i32, i32, i32
  }
}

</mosaic_0001>

<llo_original>
// kernel: cam_forward.3
$region0: #{cam_forward.3}
  #allocation0 [shape = 'u32[]', space=smem, size = 0x4, offset = 0x4, fixed_abs, tag = 'smem constant byte address 0x4 - core index']
  #allocation1 [shape = 'u32[144,128]{1,0:T(1,128)}', space=vmem, size = 0x12000, scoped, tag = 'internal scratch']
  %s0 = inlined_call_operand.vmem [shape: f32[2,8,256], index: 0, kind: input, shape index: {}]
  %s1 = inlined_call_operand.vmem [shape: f32[2,8,256], index: 1, kind: input, shape index: {}]
  %s2 = inlined_call_operand.vmem [shape: f32[8,1], index: 2, kind: input, shape index: {}]
  %s3 = inlined_call_operand.vmem [shape: f32[8,1], index: 3, kind: input, shape index: {}]
  %s4 = inlined_call_operand.vmem [shape: f32[2,8,256], index: 4, kind: output, shape index: {}]
  %s5 = sld [smem:[#allocation0]]
  $region49: #{cam_forward.3} parent=0
    _
  %s7 = ssub.s32 1, %s5
  %s8 = scalar_select 0, %s7, %s5
  loop: start=0, step=1, limit=4
  $region2: #{cam_forward.3} parent=0 // loop_pre_header
    _
  $region3: #{cam_forward.3} parent=0 // loop_header
    %s10 = sphi 0, %s14
    %p11 = scmp.ge.s32.totalorder %s10, 4
    %s20 = sphi 0, %s22
    %s23 = sphi 0, %s20
    %s24 = sphi 0, %s23
    %s40 = sphi 0, %s24
    %s46 = sphi 0, %s48
    %s49 = sphi 0, %s46
    %s50 = sphi 0, %s49
    %s66 = sphi 0, %s50
    %s70 = sphi 0, %s70
    %s72 = sphi 0, %s70
    %s73 = sphi 0, %s72
    %s87 = sphi 0, %s73
    %s91 = sphi 0, %s91
    %s93 = sphi 0, %s91
    %s94 = sphi 0, %s93
    %s108 = sphi 0, %s94
    %s114 = sphi 0, %s116
    %s117 = sphi 0, %s114
    %s118 = sphi 0, %s117
    %s134 = sphi 0, %s118
  $region4: #{cam_forward.3} parent=0 // loop_header_branch
    %13 = sbr.rel (%p11) target = $region8
  $region5: #{cam_forward.3} parent=0 // loop_body
    %s15 = ssub.s32 %s10, 1
    %s16 = ssub.s32 %s10, 2
    %s17 = sadd.s32 %s10, 1
    %s18 = ssub.s32 %s10, %s17
    %p19 = scmp.eq.s32.totalorder %s18, 0
    %s21 = sadd.s32 %s20, 1
    %s22 = scalar_select %p19, %s20, %s21
    %p25 = pneg %p19
    %p26 = scmp.eq.s32.totalorder %s10, 1
    %p27 = por %p25, %p26
    %p28 = scmp.ne.s32.totalorder %s20, %s23
    %p29 = scmp.eq.s32.totalorder %s10, 0
    %p30 = por %p28, %p29
    %p31 = scmp.ne.s32.totalorder %s20, %s23
    %p32 = scmp.eq.s32.totalorder %s15, 1
    %p33 = por %p31, %p32
    %p34 = scmp.ne.s32.totalorder %s23, %s24
    %p35 = scmp.eq.s32.totalorder %s15, 0
    %p36 = por %p34, %p35
    %p37 = scmp.ne.s32.totalorder %s23, %s24
    %p38 = scmp.eq.s32.totalorder %s16, 1
    %p39 = por %p37, %p38
    %p41 = scmp.ne.s32.totalorder %s24, %s40
    %p42 = scmp.eq.s32.totalorder %s16, 0
    %p43 = por %p41, %p42
    %s44 = ssub.s32 %s10, %s17
    %p45 = scmp.eq.s32.totalorder %s44, 0
    %s47 = sadd.s32 %s46, 1
    %s48 = scalar_select %p45, %s46, %s47
    %p51 = pneg %p45
    %p52 = scmp.eq.s32.totalorder %s10, 1
    %p53 = por %p51, %p52
    %p54 = scmp.ne.s32.totalorder %s46, %s49
    %p55 = scmp.eq.s32.totalorder %s10, 0
    %p56 = por %p54, %p55
    %p57 = scmp.ne.s32.totalorder %s46, %s49
    %p58 = scmp.eq.s32.totalorder %s15, 1
    %p59 = por %p57, %p58
    %p60 = scmp.ne.s32.totalorder %s49, %s50
    %p61 = scmp.eq.s32.totalorder %s15, 0
    %p62 = por %p60, %p61
    %p63 = scmp.ne.s32.totalorder %s49, %s50
    %p64 = scmp.eq.s32.totalorder %s16, 1
    %p65 = por %p63, %p64
    %p67 = scmp.ne.s32.totalorder %s50, %s66
    %p68 = scmp.eq.s32.totalorder %s16, 0
    %p69 = por %p67, %p68
    %s71 = sadd.s32 %s70, 1
    %p74 = scmp.eq.s32.totalorder %s10, 1
    %p75 = scmp.ne.s32.totalorder %s70, %s72
    %p76 = scmp.eq.s32.totalorder %s10, 0
    %p77 = por %p75, %p76
    %p78 = scmp.ne.s32.totalorder %s70, %s72
    %p79 = scmp.eq.s32.totalorder %s15, 1
    %p80 = por %p78, %p79
    %p81 = scmp.ne.s32.totalorder %s72, %s73
    %p82 = scmp.eq.s32.totalorder %s15, 0
    %p83 = por %p81, %p82
    %p84 = scmp.ne.s32.totalorder %s72, %s73
    %p85 = scmp.eq.s32.totalorder %s16, 1
    %p86 = por %p84, %p85
    %p88 = scmp.ne.s32.totalorder %s73, %s87
    %p89 = scmp.eq.s32.totalorder %s16, 0
    %p90 = por %p88, %p89
    %s92 = sadd.s32 %s91, 1
    %p95 = scmp.eq.s32.totalorder %s10, 1
    %p96 = scmp.ne.s32.totalorder %s91, %s93
    %p97 = scmp.eq.s32.totalorder %s10, 0
    %p98 = por %p96, %p97
    %p99 = scmp.ne.s32.totalorder %s91, %s93
    %p100 = scmp.eq.s32.totalorder %s15, 1
    %p101 = por %p99, %p100
    %p102 = scmp.ne.s32.totalorder %s93, %s94
    %p103 = scmp.eq.s32.totalorder %s15, 0
    %p104 = por %p102, %p103
    %p105 = scmp.ne.s32.totalorder %s93, %s94
    %p106 = scmp.eq.s32.totalorder %s16, 1
    %p107 = por %p105, %p106
    %p109 = scmp.ne.s32.totalorder %s94, %s108
    %p110 = scmp.eq.s32.totalorder %s16, 0
    %p111 = por %p109, %p110
    %s112 = ssub.s32 %s10, %s17
    %p113 = scmp.eq.s32.totalorder %s112, 0
    %s115 = sadd.s32 %s114, 1
    %s116 = scalar_select %p113, %s114, %s115
    %p119 = pneg %p113
    %p120 = scmp.eq.s32.totalorder %s10, 1
    %p121 = por %p119, %p120
    %p122 = scmp.ne.s32.totalorder %s114, %s117
    %p123 = scmp.eq.s32.totalorder %s10, 0
    %p124 = por %p122, %p123
    %p125 = scmp.ne.s32.totalorder %s114, %s117
    %p126 = scmp.eq.s32.totalorder %s15, 1
    %p127 = por %p125, %p126
    %p128 = scmp.ne.s32.totalorder %s117, %s118
    %p129 = scmp.eq.s32.totalorder %s15, 0
    %p130 = por %p128, %p129
    %p131 = scmp.ne.s32.totalorder %s117, %s118
    %p132 = scmp.eq.s32.totalorder %s16, 1
    %p133 = por %p131, %p132
    %p135 = scmp.ne.s32.totalorder %s118, %s134
    %p136 = scmp.eq.s32.totalorder %s16, 0
    %p137 = por %p135, %p136
    %p138 = scmp.le.s32.totalorder 1, %s10
    %p139 = scmp.lt.s32.totalorder %s10, 3
    %p140 = pnand %p138, %p139
    %p141 = pneg %p140
    // Predicated region
    $region9: #{cam_forward.3} parent=5 // pred_check
      _
    $region10: #{cam_forward.3} parent=5 // pred_check_branch
      %143 = sbr.rel (%p140) target = $region12
    $region11: #{cam_forward.3} parent=5 // pred_region
      %s144 = ssub.s32 %s10, 1
      // Predicated region
      $region13: #{cam_forward.3} parent=11 // pred_check
        %p145 = pneg %p83
      $region14: #{cam_forward.3} parent=11 // pred_check_branch
        %147 = sbr.rel (%p145) target = $region16
      $region15: #{cam_forward.3} parent=11 // pred_region
        _
      $region16: #{cam_forward.3} parent=11 // pred_fallthru
        _
      // Predicated region
      $region17: #{cam_forward.3} parent=11 // pred_check
        %p148 = pneg %p104
      $region18: #{cam_forward.3} parent=11 // pred_check_branch
        %150 = sbr.rel (%p148) target = $region20
      $region19: #{cam_forward.3} parent=11 // pred_region
        _
      $region20: #{cam_forward.3} parent=11 // pred_fallthru
        _
    $region12: #{cam_forward.3} parent=5 // pred_fallthru
      _
    %p151 = scmp.lt.s32.totalorder %s10, 2
    // Predicated region
    $region21: #{cam_forward.3} parent=5 // pred_check
      %p152 = pneg %p151
    $region22: #{cam_forward.3} parent=5 // pred_check_branch
      %154 = sbr.rel (%p152) target = $region24
    $region23: #{cam_forward.3} parent=5 // pred_region
      // Predicated region
      $region25: #{cam_forward.3} parent=23 // pred_check
        %p155 = pneg %p30
      $region26: #{cam_forward.3} parent=23 // pred_check_branch
        %157 = sbr.rel (%p155) target = $region28
      $region27: #{cam_forward.3} parent=23 // pred_region
        %p158 = scmp.lt.s32.totalorder %s10, 1
        %s159 = scalar_select %p158, %s10, 1
        %s160 = smul.addr %s159, 2
        %s161 = smul.addr %s160, 8
        %s162 = scalar_lea.vmem %s0, %s161
      $region28: #{cam_forward.3} parent=23 // pred_fallthru
        _
      // Predicated region
      $region29: #{cam_forward.3} parent=23 // pred_check
        %p163 = pneg %p56
      $region30: #{cam_forward.3} parent=23 // pred_check_branch
        %165 = sbr.rel (%p163) target = $region32
      $region31: #{cam_forward.3} parent=23 // pred_region
        %p166 = scmp.lt.s32.totalorder %s10, 1
        %s167 = scalar_select %p166, %s10, 1
        %s168 = smul.addr %s167, 2
        %s169 = smul.addr %s168, 8
        %s170 = scalar_lea.vmem %s1, %s169
      $region32: #{cam_forward.3} parent=23 // pred_fallthru
        _
    $region24: #{cam_forward.3} parent=5 // pred_fallthru
      _
    %p171 = scmp.le.s32.totalorder 1, %s10
    %p172 = scmp.lt.s32.totalorder %s10, 3
    %p173 = pnand %p171, %p172
    %p174 = pneg %p173
    // Predicated region
    $region33: #{cam_forward.3} parent=5 // pred_check
      _
    $region34: #{cam_forward.3} parent=5 // pred_check_branch
      %176 = sbr.rel (%p173) target = $region36
    $region35: #{cam_forward.3} parent=5 // pred_region
      %s177 = ssub.s32 %s10, 1
      %p178 = scmp.lt.s32.totalorder %s15, 1
      %s179 = scalar_select %p178, %s15, 1
      %s180 = smul.addr %s179, 2
      %s181 = smul.addr %s180, 8
      %s182 = scalar_lea.vmem %s0, %s181
      %p183 = pneg %p36
      %p184 = pneg %p33
      %p185 = scmp.lt.s32.totalorder %s15, 1
      %s186 = scalar_select %p185, %s15, 1
      %s187 = smul.addr %s186, 2
      %s188 = smul.addr %s187, 8
      %s189 = scalar_lea.vmem %s1, %s188
      %p190 = pneg %p62
      %p191 = pneg %p59
      %p192 = pneg %p83
      %p193 = pneg %p80
      %p194 = pneg %p104
      %p195 = pneg %p101
      %p196 = pneg %p130
      %p197 = pneg %p127
      %p198 = scmp.lt.s32.totalorder %s15, 1
      %s199 = scalar_select %p198, %s15, 1
      %s200 = smul.addr %s199, 2
      %s201 = smul.addr %s200, 8
      %s202 = scalar_lea.vmem %s4, %s201
      %p203 = scmp.lt.s32.totalorder %s15, 1
      %s204 = scalar_select %p203, %s15, 1
      %s205 = smul.addr %s204, 2
      %s206 = smul.addr %s205, 8
      %s207 = scalar_lea.vmem %s0, %s206
      %p208 = scmp.lt.s32.totalorder %s15, 1
      %s209 = scalar_select %p208, %s15, 1
      %s210 = smul.addr %s209, 2
      %s211 = smul.addr %s210, 8
      %s212 = scalar_lea.vmem %s1, %s211
      %p213 = scmp.lt.s32.totalorder %s15, 1
      %s214 = scalar_select %p213, %s15, 1
      %s215 = smul.addr %s214, 2
      %s216 = smul.addr %s215, 8
      %s217 = scalar_lea.vmem %s4, %s216
      %v218 = vld [vmem:[%s207] sm:$0xff]
      %v219 = vld [vmem:[%s207 + $0x8] sm:$0xff]
      %v220 = vld [vmem:[%s212] sm:$0xff]
      %v221 = vld [vmem:[%s212 + $0x8] sm:$0xff]
      %v222 = vld [vmem:[%s2] sm:$0xff]
      %224 = vset.pattern.permute.xlu0 0
      %225 = vperm.xlu0 %224, %v222
      %v226 = vpop.permute.xlu0 %225
      %v228 = vmul.f32 %v218, %v226
      %v229 = vmul.f32 %v219, %v226
      %v230 = vld [vmem:[%s3] sm:$0xff]
      %232 = vset.pattern.permute.xlu0 0
      %233 = vperm.xlu0 %232, %v230
      %v234 = vpop.permute.xlu0 %233
      %v236 = vadd.f32 %v228, %v234
      %v237 = vadd.f32 %v229, %v234
      %v238 = vadd.f32 %v236, %v220
      %v239 = vadd.f32 %v237, %v221
      %240 = vst [vmem:[%s217] sm:$0xff] %v238
      %241 = vst [vmem:[%s217 + $0x8] sm:$0xff] %v239
      %p242 = scmp.lt.s32.totalorder %s15, 1
      %s243 = scalar_select %p242, %s15, 1
      %s244 = smul.addr %s243, 2
      %s245 = smul.addr %s244, 8
      %s246 = scalar_lea.vmem %s4, %s245
      // Predicated region
      $region37: #{cam_forward.3} parent=35 // pred_check
        %p247 = pneg %p127
      $region38: #{cam_forward.3} parent=35 // pred_check_branch
        %249 = sbr.rel (%p247) target = $region40
      $region39: #{cam_forward.3} parent=35 // pred_region
        _
      $region40: #{cam_forward.3} parent=35 // pred_fallthru
        _
    $region36: #{cam_forward.3} parent=5 // pred_fallthru
      _
    %p250 = scmp.le.s32.totalorder 2, %s10
    // Predicated region
    $region41: #{cam_forward.3} parent=5 // pred_check
      %p251 = pneg %p250
    $region42: #{cam_forward.3} parent=5 // pred_check_branch
      %253 = sbr.rel (%p251) target = $region44
    $region43: #{cam_forward.3} parent=5 // pred_region
      %s254 = ssub.s32 %s10, 2
      // Predicated region
      $region45: #{cam_forward.3} parent=43 // pred_check
        %p255 = pneg %p133
      $region46: #{cam_forward.3} parent=43 // pred_check_branch
        %257 = sbr.rel (%p255) target = $region48
      $region47: #{cam_forward.3} parent=43 // pred_region
        %p258 = scmp.lt.s32.totalorder %s16, 1
        %s259 = scalar_select %p258, %s16, 1
        %s260 = smul.addr %s259, 2
        %s261 = smul.addr %s260, 8
        %s262 = scalar_lea.vmem %s4, %s261
      $region48: #{cam_forward.3} parent=43 // pred_fallthru
        _
    $region44: #{cam_forward.3} parent=5 // pred_fallthru
      _
  $region6: #{cam_forward.3} parent=0 // loop_footer
    %s14 = sadd.s32 1, %s10
  $region7: #{cam_forward.3} parent=0 // loop_footer_branch
    %9 = sbr.rel target = $region3
  $region8: #{cam_forward.3} parent=0 // loop_exit
    _

// kernel: cam_forward.2
$region0: #{cam_forward.2}
  #allocation0 [shape = 'u32[]', space=smem, size = 0x4, offset = 0x4, fixed_abs, tag = 'smem constant byte address 0x4 - core index']
  #allocation1 [shape = 'u32[144,128]{1,0:T(1,128)}', space=vmem, size = 0x12000, scoped, tag = 'internal scratch']
  #allocation2 [shape = 'f32[8,1]{1,0:T(8,128)}', space=vmem, size = 0x1000, scoped, tag = 'scratch operand']
  #allocation3 [shape = 'f32[8,1]{1,0:T(8,128)}', space=vmem, size = 0x1000, scoped, tag = 'scratch operand']
  %s0 = inlined_call_operand.vmem [shape: f32[2,8,256], index: 0, kind: input, shape index: {}]
  %s1 = inlined_call_operand.vmem [shape: f32[2,256,8], index: 1, kind: input, shape index: {}]
  %s2 = inlined_call_operand.vmem [shape: f32[8,8], index: 2, kind: input, shape index: {}]
  %s3 = inlined_call_operand.vmem [shape: f32[8,1], index: 3, kind: input, shape index: {}]
  %s4 = inlined_call_operand.vmem [shape: f32[8,1], index: 4, kind: input, shape index: {}]
  %s5 = inlined_call_operand.vmem [shape: f32[2,8,256], index: 5, kind: output, shape index: {0}]
  %s6 = inlined_call_operand.vmem [shape: f32[8,1], index: 6, kind: output, shape index: {1}]
  %s7 = inlined_call_operand.vmem [shape: f32[8,1], index: 7, kind: output, shape index: {2}]
  %8 = xla_tuple %s5, %s6, %s7
  %s9 = sld [smem:[#allocation0]]
  $region77: #{cam_forward.2} parent=0
    _
  %s11 = ssub.s32 1, %s9
  %s12 = scalar_select 0, %s11, %s9
  loop: start=0, step=1, limit=4
  $region2: #{cam_forward.2} parent=0 // loop_pre_header
    _
  $region3: #{cam_forward.2} parent=0 // loop_header
    %s14 = sphi 0, %s18
    %p15 = scmp.ge.s32.totalorder %s14, 4
    %s24 = sphi 0, %s26
    %s27 = sphi 0, %s24
    %s28 = sphi 0, %s27
    %s44 = sphi 0, %s28
    %s50 = sphi 0, %s52
    %s53 = sphi 0, %s50
    %s54 = sphi 0, %s53
    %s70 = sphi 0, %s54
    %s74 = sphi 0, %s74
    %s76 = sphi 0, %s74
    %s77 = sphi 0, %s76
    %s91 = sphi 0, %s77
    %s95 = sphi 0, %s95
    %s97 = sphi 0, %s95
    %s98 = sphi 0, %s97
    %s112 = sphi 0, %s98
    %s116 = sphi 0, %s116
    %s118 = sphi 0, %s116
    %s119 = sphi 0, %s118
    %s133 = sphi 0, %s119
    %s139 = sphi 0, %s141
    %s142 = sphi 0, %s139
    %s143 = sphi 0, %s142
    %s159 = sphi 0, %s143
    %s163 = sphi 0, %s163
    %s165 = sphi 0, %s163
    %s166 = sphi 0, %s165
    %s180 = sphi 0, %s166
    %s184 = sphi 0, %s184
    %s186 = sphi 0, %s184
    %s187 = sphi 0, %s186
    %s201 = sphi 0, %s187
  $region4: #{cam_forward.2} parent=0 // loop_header_branch
    %17 = sbr.rel (%p15) target = $region8
  $region5: #{cam_forward.2} parent=0 // loop_body
    %s19 = ssub.s32 %s14, 1
    %s20 = ssub.s32 %s14, 2
    %s21 = sadd.s32 %s14, 1
    %s22 = ssub.s32 %s14, %s21
    %p23 = scmp.eq.s32.totalorder %s22, 0
    %s25 = sadd.s32 %s24, 1
    %s26 = scalar_select %p23, %s24, %s25
    %p29 = pneg %p23
    %p30 = scmp.eq.s32.totalorder %s14, 1
    %p31 = por %p29, %p30
    %p32 = scmp.ne.s32.totalorder %s24, %s27
    %p33 = scmp.eq.s32.totalorder %s14, 0
    %p34 = por %p32, %p33
    %p35 = scmp.ne.s32.totalorder %s24, %s27
    %p36 = scmp.eq.s32.totalorder %s19, 1
    %p37 = por %p35, %p36
    %p38 = scmp.ne.s32.totalorder %s27, %s28
    %p39 = scmp.eq.s32.totalorder %s19, 0
    %p40 = por %p38, %p39
    %p41 = scmp.ne.s32.totalorder %s27, %s28
    %p42 = scmp.eq.s32.totalorder %s20, 1
    %p43 = por %p41, %p42
    %p45 = scmp.ne.s32.totalorder %s28, %s44
    %p46 = scmp.eq.s32.totalorder %s20, 0
    %p47 = por %p45, %p46
    %s48 = ssub.s32 %s14, %s21
    %p49 = scmp.eq.s32.totalorder %s48, 0
    %s51 = sadd.s32 %s50, 1
    %s52 = scalar_select %p49, %s50, %s51
    %p55 = pneg %p49
    %p56 = scmp.eq.s32.totalorder %s14, 1
    %p57 = por %p55, %p56
    %p58 = scmp.ne.s32.totalorder %s50, %s53
    %p59 = scmp.eq.s32.totalorder %s14, 0
    %p60 = por %p58, %p59
    %p61 = scmp.ne.s32.totalorder %s50, %s53
    %p62 = scmp.eq.s32.totalorder %s19, 1
    %p63 = por %p61, %p62
    %p64 = scmp.ne.s32.totalorder %s53, %s54
    %p65 = scmp.eq.s32.totalorder %s19, 0
    %p66 = por %p64, %p65
    %p67 = scmp.ne.s32.totalorder %s53, %s54
    %p68 = scmp.eq.s32.totalorder %s20, 1
    %p69 = por %p67, %p68
    %p71 = scmp.ne.s32.totalorder %s54, %s70
    %p72 = scmp.eq.s32.totalorder %s20, 0
    %p73 = por %p71, %p72
    %s75 = sadd.s32 %s74, 1
    %p78 = scmp.eq.s32.totalorder %s14, 1
    %p79 = scmp.ne.s32.totalorder %s74, %s76
    %p80 = scmp.eq.s32.totalorder %s14, 0
    %p81 = por %p79, %p80
    %p82 = scmp.ne.s32.totalorder %s74, %s76
    %p83 = scmp.eq.s32.totalorder %s19, 1
    %p84 = por %p82, %p83
    %p85 = scmp.ne.s32.totalorder %s76, %s77
    %p86 = scmp.eq.s32.totalorder %s19, 0
    %p87 = por %p85, %p86
    %p88 = scmp.ne.s32.totalorder %s76, %s77
    %p89 = scmp.eq.s32.totalorder %s20, 1
    %p90 = por %p88, %p89
    %p92 = scmp.ne.s32.totalorder %s77, %s91
    %p93 = scmp.eq.s32.totalorder %s20, 0
    %p94 = por %p92, %p93
    %s96 = sadd.s32 %s95, 1
    %p99 = scmp.eq.s32.totalorder %s14, 1
    %p100 = scmp.ne.s32.totalorder %s95, %s97
    %p101 = scmp.eq.s32.totalorder %s14, 0
    %p102 = por %p100, %p101
    %p103 = scmp.ne.s32.totalorder %s95, %s97
    %p104 = scmp.eq.s32.totalorder %s19, 1
    %p105 = por %p103, %p104
    %p106 = scmp.ne.s32.totalorder %s97, %s98
    %p107 = scmp.eq.s32.totalorder %s19, 0
    %p108 = por %p106, %p107
    %p109 = scmp.ne.s32.totalorder %s97, %s98
    %p110 = scmp.eq.s32.totalorder %s20, 1
    %p111 = por %p109, %p110
    %p113 = scmp.ne.s32.totalorder %s98, %s112
    %p114 = scmp.eq.s32.totalorder %s20, 0
    %p115 = por %p113, %p114
    %s117 = sadd.s32 %s116, 1
    %p120 = scmp.eq.s32.totalorder %s14, 1
    %p121 = scmp.ne.s32.totalorder %s116, %s118
    %p122 = scmp.eq.s32.totalorder %s14, 0
    %p123 = por %p121, %p122
    %p124 = scmp.ne.s32.totalorder %s116, %s118
    %p125 = scmp.eq.s32.totalorder %s19, 1
    %p126 = por %p124, %p125
    %p127 = scmp.ne.s32.totalorder %s118, %s119
    %p128 = scmp.eq.s32.totalorder %s19, 0
    %p129 = por %p127, %p128
    %p130 = scmp.ne.s32.totalorder %s118, %s119
    %p131 = scmp.eq.s32.totalorder %s20, 1
    %p132 = por %p130, %p131
    %p134 = scmp.ne.s32.totalorder %s119, %s133
    %p135 = scmp.eq.s32.totalorder %s20, 0
    %p136 = por %p134, %p135
    %s137 = ssub.s32 %s14, %s21
    %p138 = scmp.eq.s32.totalorder %s137, 0
    %s140 = sadd.s32 %s139, 1
    %s141 = scalar_select %p138, %s139, %s140
    %p144 = pneg %p138
    %p145 = scmp.eq.s32.totalorder %s14, 1
    %p146 = por %p144, %p145
    %p147 = scmp.ne.s32.totalorder %s139, %s142
    %p148 = scmp.eq.s32.totalorder %s14, 0
    %p149 = por %p147, %p148
    %p150 = scmp.ne.s32.totalorder %s139, %s142
    %p151 = scmp.eq.s32.totalorder %s19, 1
    %p152 = por %p150, %p151
    %p153 = scmp.ne.s32.totalorder %s142, %s143
    %p154 = scmp.eq.s32.totalorder %s19, 0
    %p155 = por %p153, %p154
    %p156 = scmp.ne.s32.totalorder %s142, %s143
    %p157 = scmp.eq.s32.totalorder %s20, 1
    %p158 = por %p156, %p157
    %p160 = scmp.ne.s32.totalorder %s143, %s159
    %p161 = scmp.eq.s32.totalorder %s20, 0
    %p162 = por %p160, %p161
    %s164 = sadd.s32 %s163, 1
    %p167 = scmp.eq.s32.totalorder %s14, 1
    %p168 = scmp.ne.s32.totalorder %s163, %s165
    %p169 = scmp.eq.s32.totalorder %s14, 0
    %p170 = por %p168, %p169
    %p171 = scmp.ne.s32.totalorder %s163, %s165
    %p172 = scmp.eq.s32.totalorder %s19, 1
    %p173 = por %p171, %p172
    %p174 = scmp.ne.s32.totalorder %s165, %s166
    %p175 = scmp.eq.s32.totalorder %s19, 0
    %p176 = por %p174, %p175
    %p177 = scmp.ne.s32.totalorder %s165, %s166
    %p178 = scmp.eq.s32.totalorder %s20, 1
    %p179 = por %p177, %p178
    %p181 = scmp.ne.s32.totalorder %s166, %s180
    %p182 = scmp.eq.s32.totalorder %s20, 0
    %p183 = por %p181, %p182
    %s185 = sadd.s32 %s184, 1
    %p188 = scmp.eq.s32.totalorder %s14, 1
    %p189 = scmp.ne.s32.totalorder %s184, %s186
    %p190 = scmp.eq.s32.totalorder %s14, 0
    %p191 = por %p189, %p190
    %p192 = scmp.ne.s32.totalorder %s184, %s186
    %p193 = scmp.eq.s32.totalorder %s19, 1
    %p194 = por %p192, %p193
    %p195 = scmp.ne.s32.totalorder %s186, %s187
    %p196 = scmp.eq.s32.totalorder %s19, 0
    %p197 = por %p195, %p196
    %p198 = scmp.ne.s32.totalorder %s186, %s187
    %p199 = scmp.eq.s32.totalorder %s20, 1
    %p200 = por %p198, %p199
    %p202 = scmp.ne.s32.totalorder %s187, %s201
    %p203 = scmp.eq.s32.totalorder %s20, 0
    %p204 = por %p202, %p203
    %p205 = scmp.le.s32.totalorder 1, %s14
    %p206 = scmp.lt.s32.totalorder %s14, 3
    %p207 = pnand %p205, %p206
    %p208 = pneg %p207
    // Predicated region
    $region9: #{cam_forward.2} parent=5 // pred_check
      _
    $region10: #{cam_forward.2} parent=5 // pred_check_branch
      %210 = sbr.rel (%p207) target = $region12
    $region11: #{cam_forward.2} parent=5 // pred_region
      %s211 = ssub.s32 %s14, 1
      // Predicated region
      $region13: #{cam_forward.2} parent=11 // pred_check
        %p212 = pneg %p87
      $region14: #{cam_forward.2} parent=11 // pred_check_branch
        %214 = sbr.rel (%p212) target = $region16
      $region15: #{cam_forward.2} parent=11 // pred_region
        _
      $region16: #{cam_forward.2} parent=11 // pred_fallthru
        _
      // Predicated region
      $region17: #{cam_forward.2} parent=11 // pred_check
        %p215 = pneg %p108
      $region18: #{cam_forward.2} parent=11 // pred_check_branch
        %217 = sbr.rel (%p215) target = $region20
      $region19: #{cam_forward.2} parent=11 // pred_region
        _
      $region20: #{cam_forward.2} parent=11 // pred_fallthru
        _
      // Predicated region
      $region21: #{cam_forward.2} parent=11 // pred_check
        %p218 = pneg %p129
      $region22: #{cam_forward.2} parent=11 // pred_check_branch
        %220 = sbr.rel (%p218) target = $region24
      $region23: #{cam_forward.2} parent=11 // pred_region
        _
      $region24: #{cam_forward.2} parent=11 // pred_fallthru
        _
    $region12: #{cam_forward.2} parent=5 // pred_fallthru
      _
    %p221 = scmp.lt.s32.totalorder %s14, 2
    // Predicated region
    $region25: #{cam_forward.2} parent=5 // pred_check
      %p222 = pneg %p221
    $region26: #{cam_forward.2} parent=5 // pred_check_branch
      %224 = sbr.rel (%p222) target = $region28
    $region27: #{cam_forward.2} parent=5 // pred_region
      // Predicated region
      $region29: #{cam_forward.2} parent=27 // pred_check
        %p225 = pneg %p34
      $region30: #{cam_forward.2} parent=27 // pred_check_branch
        %227 = sbr.rel (%p225) target = $region32
      $region31: #{cam_forward.2} parent=27 // pred_region
        %p228 = scmp.lt.s32.totalorder %s14, 1
        %s229 = scalar_select %p228, %s14, 1
        %s230 = smul.addr %s229, 2
        %s231 = smul.addr %s230, 8
        %s232 = scalar_lea.vmem %s0, %s231
      $region32: #{cam_forward.2} parent=27 // pred_fallthru
        _
      // Predicated region
      $region33: #{cam_forward.2} parent=27 // pred_check
        %p233 = pneg %p60
      $region34: #{cam_forward.2} parent=27 // pred_check_branch
        %235 = sbr.rel (%p233) target = $region36
      $region35: #{cam_forward.2} parent=27 // pred_region
        %p236 = scmp.lt.s32.totalorder %s14, 1
        %s237 = scalar_select %p236, %s14, 1
        %s238 = smul.addr %s237, 32
        %s239 = smul.addr %s238, 8
        %s240 = scalar_lea.vmem %s1, %s239
      $region36: #{cam_forward.2} parent=27 // pred_fallthru
        _
    $region28: #{cam_forward.2} parent=5 // pred_fallthru
      _
    %p241 = scmp.le.s32.totalorder 1, %s14
    %p242 = scmp.lt.s32.totalorder %s14, 3
    %p243 = pnand %p241, %p242
    %p244 = pneg %p243
    // Predicated region
    $region37: #{cam_forward.2} parent=5 // pred_check
      _
    $region38: #{cam_forward.2} parent=5 // pred_check_branch
      %246 = sbr.rel (%p243) target = $region40
    $region39: #{cam_forward.2} parent=5 // pred_region
      %s247 = ssub.s32 %s14, 1
      %p248 = scmp.lt.s32.totalorder %s19, 1
      %s249 = scalar_select %p248, %s19, 1
      %s250 = smul.addr %s249, 2
      %s251 = smul.addr %s250, 8
      %s252 = scalar_lea.vmem %s0, %s251
      %p253 = pneg %p40
      %p254 = pneg %p37
      %p255 = scmp.lt.s32.totalorder %s19, 1
      %s256 = scalar_select %p255, %s19, 1
      %s257 = smul.addr %s256, 32
      %s258 = smul.addr %s257, 8
      %s259 = scalar_lea.vmem %s1, %s258
      %p260 = pneg %p66
      %p261 = pneg %p63
      %p262 = pneg %p87
      %p263 = pneg %p84
      %p264 = pneg %p108
      %p265 = pneg %p105
      %p266 = pneg %p129
      %p267 = pneg %p126
      %p268 = pneg %p155
      %p269 = pneg %p152
      %p270 = scmp.lt.s32.totalorder %s19, 1
      %s271 = scalar_select %p270, %s19, 1
      %s272 = smul.addr %s271, 2
      %s273 = smul.addr %s272, 8
      %s274 = scalar_lea.vmem %s5, %s273
      %p275 = pneg %p176
      %p276 = pneg %p173
      %p277 = pneg %p197
      %p278 = pneg %p194
      %p279 = scmp.lt.s32.totalorder %s19, 1
      %s280 = scalar_select %p279, %s19, 1
      %s281 = smul.addr %s280, 2
      %s282 = smul.addr %s281, 8
      %s283 = scalar_lea.vmem %s0, %s282
      %p284 = scmp.lt.s32.totalorder %s19, 1
      %s285 = scalar_select %p284, %s19, 1
      %s286 = smul.addr %s285, 32
      %s287 = smul.addr %s286, 8
      %s288 = scalar_lea.vmem %s1, %s287
      %p289 = scmp.lt.s32.totalorder %s19, 1
      %s290 = scalar_select %p289, %s19, 1
      %s291 = smul.addr %s290, 2
      %s292 = smul.addr %s291, 8
      %s293 = scalar_lea.vmem %s5, %s292
      %p294 = scmp.eq.s32.totalorder %s19, 0
      // Predicated region
      $region41: #{cam_forward.2} parent=39 // pred_check
        %p295 = pneg %p294
      $region42: #{cam_forward.2} parent=39 // pred_check_branch
        %297 = sbr.rel (%p295) target = $region44
      $region43: #{cam_forward.2} parent=39 // pred_region
        %vm298 = vcmask 7168
        %299 = vst.msk [vmem:[#allocation2] sm:$0xff] %vm298, 0.0
        %300 = vst.msk [vmem:[#allocation3] sm:$0xff] %vm298, 0.0
      $region44: #{cam_forward.2} parent=39 // pred_fallthru
        _
      %v301 = vld [vmem:[%s283] sm:$0xff]
      %v302 = vld [vmem:[%s283 + $0x8] sm:$0xff]
      %v303 = vld [vmem:[%s288] sm:$0xff]
      %v304 = vld [vmem:[%s288 + $0x8] sm:$0xff]
      %v305 = vld [vmem:[%s288 + $0x10] sm:$0xff]
      %v306 = vld [vmem:[%s288 + $0x18] sm:$0xff]
      %v307 = vld [vmem:[%s288 + $0x20] sm:$0xff]
      %v308 = vld [vmem:[%s288 + $0x28] sm:$0xff]
      %v309 = vld [vmem:[%s288 + $0x30] sm:$0xff]
      %v310 = vld [vmem:[%s288 + $0x38] sm:$0xff]
      %v311 = vld [vmem:[%s288 + $0x40] sm:$0xff]
      %v312 = vld [vmem:[%s288 + $0x48] sm:$0xff]
      %v313 = vld [vmem:[%s288 + $0x50] sm:$0xff]
      %v314 = vld [vmem:[%s288 + $0x58] sm:$0xff]
      %v315 = vld [vmem:[%s288 + $0x60] sm:$0xff]
      %v316 = vld [vmem:[%s288 + $0x68] sm:$0xff]
      %v317 = vld [vmem:[%s288 + $0x70] sm:$0xff]
      %v318 = vld [vmem:[%s288 + $0x78] sm:$0xff]
      %v319 = vld [vmem:[%s288 + $0x80] sm:$0xff]
      %v320 = vld [vmem:[%s288 + $0x88] sm:$0xff]
      %v321 = vld [vmem:[%s288 + $0x90] sm:$0xff]
      %v322 = vld [vmem:[%s288 + $0x98] sm:$0xff]
      %v323 = vld [vmem:[%s288 + $0xa0] sm:$0xff]
      %v324 = vld [vmem:[%s288 + $0xa8] sm:$0xff]
      %v325 = vld [vmem:[%s288 + $0xb0] sm:$0xff]
      %v326 = vld [vmem:[%s288 + $0xb8] sm:$0xff]
      %v327 = vld [vmem:[%s288 + $0xc0] sm:$0xff]
      %v328 = vld [vmem:[%s288 + $0xc8] sm:$0xff]
      %v329 = vld [vmem:[%s288 + $0xd0] sm:$0xff]
      %v330 = vld [vmem:[%s288 + $0xd8] sm:$0xff]
      %v331 = vld [vmem:[%s288 + $0xe0] sm:$0xff]
      %v332 = vld [vmem:[%s288 + $0xe8] sm:$0xff]
      %v333 = vld [vmem:[%s288 + $0xf0] sm:$0xff]
      %v334 = vld [vmem:[%s288 + $0xf8] sm:$0xff]
      %335 = vmatprep.subr.mxu0 0.0
      %v336 = vand.u32 %v303, 4294901760
      %337 = vmatpush1.msra.mxu0 %v336
      %338 = vmatprep.subr.mxu0 0.0
      %v339 = vand.u32 %v304, 4294901760
      %340 = vmatpush1.msra.mxu0 %v339
      %341 = vmatprep.subr.mxu0 0.0
      %v342 = vand.u32 %v305, 4294901760
      %343 = vmatpush1.msra.mxu0 %v342
      %344 = vmatprep.subr.mxu0 0.0
      %v345 = vand.u32 %v306, 4294901760
      %346 = vmatpush1.msra.mxu0 %v345
      %347 = vmatprep.subr.mxu0 0.0
      %v348 = vand.u32 %v307, 4294901760
      %349 = vmatpush1.msra.mxu0 %v348
      %350 = vmatprep.subr.mxu0 0.0
      %v351 = vand.u32 %v308, 4294901760
      %352 = vmatpush1.msra.mxu0 %v351
      %353 = vmatprep.subr.mxu0 0.0
      %v354 = vand.u32 %v309, 4294901760
      %355 = vmatpush1.msra.mxu0 %v354
      %356 = vmatprep.subr.mxu0 0.0
      %v357 = vand.u32 %v310, 4294901760
      %358 = vmatpush1.msra.mxu0 %v357
      %359 = vmatprep.subr.mxu0 0.0
      %v360 = vand.u32 %v311, 4294901760
      %361 = vmatpush1.msra.mxu0 %v360
      %362 = vmatprep.subr.mxu0 0.0
      %v363 = vand.u32 %v312, 4294901760
      %364 = vmatpush1.msra.mxu0 %v363
      %365 = vmatprep.subr.mxu0 0.0
      %v366 = vand.u32 %v313, 4294901760
      %367 = vmatpush1.msra.mxu0 %v366
      %368 = vmatprep.subr.mxu0 0.0
      %v369 = vand.u32 %v314, 4294901760
      %370 = vmatpush1.msra.mxu0 %v369
      %371 = vmatprep.subr.mxu0 0.0
      %v372 = vand.u32 %v315, 4294901760
      %373 = vmatpush1.msra.mxu0 %v372
      %374 = vmatprep.subr.mxu0 0.0
      %v375 = vand.u32 %v316, 4294901760
      %376 = vmatpush1.msra.mxu0 %v375
      %377 = vmatprep.subr.mxu0 0.0
      %v378 = vand.u32 %v317, 4294901760
      %379 = vmatpush1.msra.mxu0 %v378
      %380 = vmatprep.subr.mxu0 0.0
      %v381 = vand.u32 %v318, 4294901760
      %382 = vmatpush1.msra.mxu0 %v381
      %383 = vmatprep.subr.mxu0 0.0
      %v384 = vand.u32 %v319, 4294901760
      %385 = vmatpush1.msra.mxu0 %v384
      %386 = vmatprep.subr.mxu0 0.0
      %v387 = vand.u32 %v320, 4294901760
      %388 = vmatpush1.msra.mxu0 %v387
      %389 = vmatprep.subr.mxu0 0.0
      %v390 = vand.u32 %v321, 4294901760
      %391 = vmatpush1.msra.mxu0 %v390
      %392 = vmatprep.subr.mxu0 0.0
      %v393 = vand.u32 %v322, 4294901760
      %394 = vmatpush1.msra.mxu0 %v393
      %395 = vmatprep.subr.mxu0 0.0
      %v396 = vand.u32 %v323, 4294901760
      %397 = vmatpush1.msra.mxu0 %v396
      %398 = vmatprep.subr.mxu0 0.0
      %v399 = vand.u32 %v324, 4294901760
      %400 = vmatpush1.msra.mxu0 %v399
      %401 = vmatprep.subr.mxu0 0.0
      %v402 = vand.u32 %v325, 4294901760
      %403 = vmatpush1.msra.mxu0 %v402
      %404 = vmatprep.subr.mxu0 0.0
      %v405 = vand.u32 %v326, 4294901760
      %406 = vmatpush1.msra.mxu0 %v405
      %407 = vmatprep.subr.mxu0 0.0
      %v408 = vand.u32 %v327, 4294901760
      %409 = vmatpush1.msra.mxu0 %v408
      %410 = vmatprep.subr.mxu0 0.0
      %v411 = vand.u32 %v328, 4294901760
      %412 = vmatpush1.msra.mxu0 %v411
      %413 = vmatprep.subr.mxu0 0.0
      %v414 = vand.u32 %v329, 4294901760
      %415 = vmatpush1.msra.mxu0 %v414
      %416 = vmatprep.subr.mxu0 0.0
      %v417 = vand.u32 %v330, 4294901760
      %418 = vmatpush1.msra.mxu0 %v417
      %419 = vmatprep.subr.mxu0 0.0
      %v420 = vand.u32 %v331, 4294901760
      %421 = vmatpush1.msra.mxu0 %v420
      %422 = vmatprep.subr.mxu0 0.0
      %v423 = vand.u32 %v332, 4294901760
      %424 = vmatpush1.msra.mxu0 %v423
      %425 = vmatprep.subr.mxu0 0.0
      %v426 = vand.u32 %v333, 4294901760
      %427 = vmatpush1.msra.mxu0 %v426
      %428 = vmatprep.subr.mxu0 0.0
      %v429 = vand.u32 %v334, 4294901760
      %430 = vmatpush1.msra.mxu0 %v429
      %v431 = vand.u32 %v302, 4294901760
      %v432 = vsub.f32 %v302, %v431
      %v433 = vand.u32 %v432, 4294901760
      %v434 = vsub.f32 %v432, %v433
      %v435 = vand.u32 %v434, 4294901760
      %436 = vmatprep.mubr.f32.mxu0 %v435
      %v437 = vand.u32 %v301, 4294901760
      %v438 = vsub.f32 %v301, %v437
      %v439 = vand.u32 %v438, 4294901760
      %v440 = vsub.f32 %v438, %v439
      %v441 = vand.u32 %v440, 4294901760
      %442 = vmatmul.mubr.f32.gmra.mrb[0].mxu0 %v441
      %v443 = vpop.f32.mrb[0].mxu0
      %v444 = vadd.f32 0.0, %v443
      %v445 = vpop.f32.mrb[0].mxu0
      %446 = vdwg.mxu0
      %447 = vmatprep.subr.mxu0 0.0
      %v448 = vand.u32 %v303, 4294901760
      %v449 = vsub.f32 %v303, %v448
      %v450 = vand.u32 %v449, 4294901760
      %v451 = vsub.f32 %v449, %v450
      %v452 = vand.u32 %v451, 4294901760
      %453 = vmatpush1.msra.mxu0 %v452
      %454 = vmatprep.subr.mxu0 0.0
      %v455 = vand.u32 %v304, 4294901760
      %v456 = vsub.f32 %v304, %v455
      %v457 = vand.u32 %v456, 4294901760
      %v458 = vsub.f32 %v456, %v457
      %v459 = vand.u32 %v458, 4294901760
      %460 = vmatpush1.msra.mxu0 %v459
      %461 = vmatprep.subr.mxu0 0.0
      %v462 = vand.u32 %v305, 4294901760
      %v463 = vsub.f32 %v305, %v462
      %v464 = vand.u32 %v463, 4294901760
      %v465 = vsub.f32 %v463, %v464
      %v466 = vand.u32 %v465, 4294901760
      %467 = vmatpush1.msra.mxu0 %v466
      %468 = vmatprep.subr.mxu0 0.0
      %v469 = vand.u32 %v306, 4294901760
      %v470 = vsub.f32 %v306, %v469
      %v471 = vand.u32 %v470, 4294901760
      %v472 = vsub.f32 %v470, %v471
      %v473 = vand.u32 %v472, 4294901760
      %474 = vmatpush1.msra.mxu0 %v473
      %475 = vmatprep.subr.mxu0 0.0
      %v476 = vand.u32 %v307, 4294901760
      %v477 = vsub.f32 %v307, %v476
      %v478 = vand.u32 %v477, 4294901760
      %v479 = vsub.f32 %v477, %v478
      %v480 = vand.u32 %v479, 4294901760
      %481 = vmatpush1.msra.mxu0 %v480
      %482 = vmatprep.subr.mxu0 0.0
      %v483 = vand.u32 %v308, 4294901760
      %v484 = vsub.f32 %v308, %v483
      %v485 = vand.u32 %v484, 4294901760
      %v486 = vsub.f32 %v484, %v485
      %v487 = vand.u32 %v486, 4294901760
      %488 = vmatpush1.msra.mxu0 %v487
      %489 = vmatprep.subr.mxu0 0.0
      %v490 = vand.u32 %v309, 4294901760
      %v491 = vsub.f32 %v309, %v490
      %v492 = vand.u32 %v491, 4294901760
      %v493 = vsub.f32 %v491, %v492
      %v494 = vand.u32 %v493, 4294901760
      %495 = vmatpush1.msra.mxu0 %v494
      %496 = vmatprep.subr.mxu0 0.0
      %v497 = vand.u32 %v310, 4294901760
      %v498 = vsub.f32 %v310, %v497
      %v499 = vand.u32 %v498, 4294901760
      %v500 = vsub.f32 %v498, %v499
      %v501 = vand.u32 %v500, 4294901760
      %502 = vmatpush1.msra.mxu0 %v501
      %503 = vmatprep.subr.mxu0 0.0
      %v504 = vand.u32 %v311, 4294901760
      %v505 = vsub.f32 %v311, %v504
      %v506 = vand.u32 %v505, 4294901760
      %v507 = vsub.f32 %v505, %v506
      %v508 = vand.u32 %v507, 4294901760
      %509 = vmatpush1.msra.mxu0 %v508
      %510 = vmatprep.subr.mxu0 0.0
      %v511 = vand.u32 %v312, 4294901760
      %v512 = vsub.f32 %v312, %v511
      %v513 = vand.u32 %v512, 4294901760
      %v514 = vsub.f32 %v512, %v513
      %v515 = vand.u32 %v514, 4294901760
      %516 = vmatpush1.msra.mxu0 %v515
      %517 = vmatprep.subr.mxu0 0.0
      %v518 = vand.u32 %v313, 4294901760
      %v519 = vsub.f32 %v313, %v518
      %v520 = vand.u32 %v519, 4294901760
      %v521 = vsub.f32 %v519, %v520
      %v522 = vand.u32 %v521, 4294901760
      %523 = vmatpush1.msra.mxu0 %v522
      %524 = vmatprep.subr.mxu0 0.0
      %v525 = vand.u32 %v314, 4294901760
      %v526 = vsub.f32 %v314, %v525
      %v527 = vand.u32 %v526, 4294901760
      %v528 = vsub.f32 %v526, %v527
      %v529 = vand.u32 %v528, 4294901760
      %530 = vmatpush1.msra.mxu0 %v529
      %531 = vmatprep.subr.mxu0 0.0
      %v532 = vand.u32 %v315, 4294901760
      %v533 = vsub.f32 %v315, %v532
      %v534 = vand.u32 %v533, 4294901760
      %v535 = vsub.f32 %v533, %v534
      %v536 = vand.u32 %v535, 4294901760
      %537 = vmatpush1.msra.mxu0 %v536
      %538 = vmatprep.subr.mxu0 0.0
      %v539 = vand.u32 %v316, 4294901760
      %v540 = vsub.f32 %v316, %v539
      %v541 = vand.u32 %v540, 4294901760
      %v542 = vsub.f32 %v540, %v541
      %v543 = vand.u32 %v542, 4294901760
      %544 = vmatpush1.msra.mxu0 %v543
      %545 = vmatprep.subr.mxu0 0.0
      %v546 = vand.u32 %v317, 4294901760
      %v547 = vsub.f32 %v317, %v546
      %v548 = vand.u32 %v547, 4294901760
      %v549 = vsub.f32 %v547, %v548
      %v550 = vand.u32 %v549, 4294901760
      %551 = vmatpush1.msra.mxu0 %v550
      %552 = vmatprep.subr.mxu0 0.0
      %v553 = vand.u32 %v318, 4294901760
      %v554 = vsub.f32 %v318, %v553
      %v555 = vand.u32 %v554, 4294901760
      %v556 = vsub.f32 %v554, %v555
      %v557 = vand.u32 %v556, 4294901760
      %558 = vmatpush1.msra.mxu0 %v557
      %559 = vmatprep.subr.mxu0 0.0
      %v560 = vand.u32 %v319, 4294901760
      %v561 = vsub.f32 %v319, %v560
      %v562 = vand.u32 %v561, 4294901760
      %v563 = vsub.f32 %v561, %v562
      %v564 = vand.u32 %v563, 4294901760
      %565 = vmatpush1.msra.mxu0 %v564
      %566 = vmatprep.subr.mxu0 0.0
      %v567 = vand.u32 %v320, 4294901760
      %v568 = vsub.f32 %v320, %v567
      %v569 = vand.u32 %v568, 4294901760
      %v570 = vsub.f32 %v568, %v569
      %v571 = vand.u32 %v570, 4294901760
      %572 = vmatpush1.msra.mxu0 %v571
      %573 = vmatprep.subr.mxu0 0.0
      %v574 = vand.u32 %v321, 4294901760
      %v575 = vsub.f32 %v321, %v574
      %v576 = vand.u32 %v575, 4294901760
      %v577 = vsub.f32 %v575, %v576
      %v578 = vand.u32 %v577, 4294901760
      %579 = vmatpush1.msra.mxu0 %v578
      %580 = vmatprep.subr.mxu0 0.0
      %v581 = vand.u32 %v322, 4294901760
      %v582 = vsub.f32 %v322, %v581
      %v583 = vand.u32 %v582, 4294901760
      %v584 = vsub.f32 %v582, %v583
      %v585 = vand.u32 %v584, 4294901760
      %586 = vmatpush1.msra.mxu0 %v585
      %587 = vmatprep.subr.mxu0 0.0
      %v588 = vand.u32 %v323, 4294901760
      %v589 = vsub.f32 %v323, %v588
      %v590 = vand.u32 %v589, 4294901760
      %v591 = vsub.f32 %v589, %v590
      %v592 = vand.u32 %v591, 4294901760
      %593 = vmatpush1.msra.mxu0 %v592
      %594 = vmatprep.subr.mxu0 0.0
      %v595 = vand.u32 %v324, 4294901760
      %v596 = vsub.f32 %v324, %v595
      %v597 = vand.u32 %v596, 4294901760
      %v598 = vsub.f32 %v596, %v597
      %v599 = vand.u32 %v598, 4294901760
      %600 = vmatpush1.msra.mxu0 %v599
      %601 = vmatprep.subr.mxu0 0.0
      %v602 = vand.u32 %v325, 4294901760
      %v603 = vsub.f32 %v325, %v602
      %v604 = vand.u32 %v603, 4294901760
      %v605 = vsub.f32 %v603, %v604
      %v606 = vand.u32 %v605, 4294901760
      %607 = vmatpush1.msra.mxu0 %v606
      %608 = vmatprep.subr.mxu0 0.0
      %v609 = vand.u32 %v326, 4294901760
      %v610 = vsub.f32 %v326, %v609
      %v611 = vand.u32 %v610, 4294901760
      %v612 = vsub.f32 %v610, %v611
      %v613 = vand.u32 %v612, 4294901760
      %614 = vmatpush1.msra.mxu0 %v613
      %615 = vmatprep.subr.mxu0 0.0
      %v616 = vand.u32 %v327, 4294901760
      %v617 = vsub.f32 %v327, %v616
      %v618 = vand.u32 %v617, 4294901760
      %v619 = vsub.f32 %v617, %v618
      %v620 = vand.u32 %v619, 4294901760
      %621 = vmatpush1.msra.mxu0 %v620
      %622 = vmatprep.subr.mxu0 0.0
      %v623 = vand.u32 %v328, 4294901760
      %v624 = vsub.f32 %v328, %v623
      %v625 = vand.u32 %v624, 4294901760
      %v626 = vsub.f32 %v624, %v625
      %v627 = vand.u32 %v626, 4294901760
      %628 = vmatpush1.msra.mxu0 %v627
      %629 = vmatprep.subr.mxu0 0.0
      %v630 = vand.u32 %v329, 4294901760
      %v631 = vsub.f32 %v329, %v630
      %v632 = vand.u32 %v631, 4294901760
      %v633 = vsub.f32 %v631, %v632
      %v634 = vand.u32 %v633, 4294901760
      %635 = vmatpush1.msra.mxu0 %v634
      %636 = vmatprep.subr.mxu0 0.0
      %v637 = vand.u32 %v330, 4294901760
      %v638 = vsub.f32 %v330, %v637
      %v639 = vand.u32 %v638, 4294901760
      %v640 = vsub.f32 %v638, %v639
      %v641 = vand.u32 %v640, 4294901760
      %642 = vmatpush1.msra.mxu0 %v641
      %643 = vmatprep.subr.mxu0 0.0
      %v644 = vand.u32 %v331, 4294901760
      %v645 = vsub.f32 %v331, %v644
      %v646 = vand.u32 %v645, 4294901760
      %v647 = vsub.f32 %v645, %v646
      %v648 = vand.u32 %v647, 4294901760
      %649 = vmatpush1.msra.mxu0 %v648
      %650 = vmatprep.subr.mxu0 0.0
      %v651 = vand.u32 %v332, 4294901760
      %v652 = vsub.f32 %v332, %v651
      %v653 = vand.u32 %v652, 4294901760
      %v654 = vsub.f32 %v652, %v653
      %v655 = vand.u32 %v654, 4294901760
      %656 = vmatpush1.msra.mxu0 %v655
      %657 = vmatprep.subr.mxu0 0.0
      %v658 = vand.u32 %v333, 4294901760
      %v659 = vsub.f32 %v333, %v658
      %v660 = vand.u32 %v659, 4294901760
      %v661 = vsub.f32 %v659, %v660
      %v662 = vand.u32 %v661, 4294901760
      %663 = vmatpush1.msra.mxu0 %v662
      %664 = vmatprep.subr.mxu0 0.0
      %v665 = vand.u32 %v334, 4294901760
      %v666 = vsub.f32 %v334, %v665
      %v667 = vand.u32 %v666, 4294901760
      %v668 = vsub.f32 %v666, %v667
      %v669 = vand.u32 %v668, 4294901760
      %670 = vmatpush1.msra.mxu0 %v669
      %v671 = vand.u32 %v302, 4294901760
      %672 = vmatprep.mubr.f32.mxu0 %v671
      %v673 = vand.u32 %v301, 4294901760
      %674 = vmatmul.mubr.f32.gmra.mrb[0].mxu0 %v673
      %v675 = vpop.f32.mrb[0].mxu0
      %v676 = vadd.f32 %v444, %v675
      %v677 = vpop.f32.mrb[0].mxu0
      %678 = vdwg.mxu0
      %679 = vmatprep.subr.mxu0 0.0
      %v680 = vand.u32 %v303, 4294901760
      %v681 = vsub.f32 %v303, %v680
      %682 = vmatpush1.msra.mxu0 %v681
      %683 = vmatprep.subr.mxu0 0.0
      %v684 = vand.u32 %v304, 4294901760
      %v685 = vsub.f32 %v304, %v684
      %686 = vmatpush1.msra.mxu0 %v685
      %687 = vmatprep.subr.mxu0 0.0
      %v688 = vand.u32 %v305, 4294901760
      %v689 = vsub.f32 %v305, %v688
      %690 = vmatpush1.msra.mxu0 %v689
      %691 = vmatprep.subr.mxu0 0.0
      %v692 = vand.u32 %v306, 4294901760
      %v693 = vsub.f32 %v306, %v692
      %694 = vmatpush1.msra.mxu0 %v693
      %695 = vmatprep.subr.mxu0 0.0
      %v696 = vand.u32 %v307, 4294901760
      %v697 = vsub.f32 %v307, %v696
      %698 = vmatpush1.msra.mxu0 %v697
      %699 = vmatprep.subr.mxu0 0.0
      %v700 = vand.u32 %v308, 4294901760
      %v701 = vsub.f32 %v308, %v700
      %702 = vmatpush1.msra.mxu0 %v701
      %703 = vmatprep.subr.mxu0 0.0
      %v704 = vand.u32 %v309, 4294901760
      %v705 = vsub.f32 %v309, %v704
      %706 = vmatpush1.msra.mxu0 %v705
      %707 = vmatprep.subr.mxu0 0.0
      %v708 = vand.u32 %v310, 4294901760
      %v709 = vsub.f32 %v310, %v708
      %710 = vmatpush1.msra.mxu0 %v709
      %711 = vmatprep.subr.mxu0 0.0
      %v712 = vand.u32 %v311, 4294901760
      %v713 = vsub.f32 %v311, %v712
      %714 = vmatpush1.msra.mxu0 %v713
      %715 = vmatprep.subr.mxu0 0.0
      %v716 = vand.u32 %v312, 4294901760
      %v717 = vsub.f32 %v312, %v716
      %718 = vmatpush1.msra.mxu0 %v717
      %719 = vmatprep.subr.mxu0 0.0
      %v720 = vand.u32 %v313, 4294901760
      %v721 = vsub.f32 %v313, %v720
      %722 = vmatpush1.msra.mxu0 %v721
      %723 = vmatprep.subr.mxu0 0.0
      %v724 = vand.u32 %v314, 4294901760
      %v725 = vsub.f32 %v314, %v724
      %726 = vmatpush1.msra.mxu0 %v725
      %727 = vmatprep.subr.mxu0 0.0
      %v728 = vand.u32 %v315, 4294901760
      %v729 = vsub.f32 %v315, %v728
      %730 = vmatpush1.msra.mxu0 %v729
      %731 = vmatprep.subr.mxu0 0.0
      %v732 = vand.u32 %v316, 4294901760
      %v733 = vsub.f32 %v316, %v732
      %734 = vmatpush1.msra.mxu0 %v733
      %735 = vmatprep.subr.mxu0 0.0
      %v736 = vand.u32 %v317, 4294901760
      %v737 = vsub.f32 %v317, %v736
      %738 = vmatpush1.msra.mxu0 %v737
      %739 = vmatprep.subr.mxu0 0.0
      %v740 = vand.u32 %v318, 4294901760
      %v741 = vsub.f32 %v318, %v740
      %742 = vmatpush1.msra.mxu0 %v741
      %743 = vmatprep.subr.mxu0 0.0
      %v744 = vand.u32 %v319, 4294901760
      %v745 = vsub.f32 %v319, %v744
      %746 = vmatpush1.msra.mxu0 %v745
      %747 = vmatprep.subr.mxu0 0.0
      %v748 = vand.u32 %v320, 4294901760
      %v749 = vsub.f32 %v320, %v748
      %750 = vmatpush1.msra.mxu0 %v749
      %751 = vmatprep.subr.mxu0 0.0
      %v752 = vand.u32 %v321, 4294901760
      %v753 = vsub.f32 %v321, %v752
      %754 = vmatpush1.msra.mxu0 %v753
      %755 = vmatprep.subr.mxu0 0.0
      %v756 = vand.u32 %v322, 4294901760
      %v757 = vsub.f32 %v322, %v756
      %758 = vmatpush1.msra.mxu0 %v757
      %759 = vmatprep.subr.mxu0 0.0
      %v760 = vand.u32 %v323, 4294901760
      %v761 = vsub.f32 %v323, %v760
      %762 = vmatpush1.msra.mxu0 %v761
      %763 = vmatprep.subr.mxu0 0.0
      %v764 = vand.u32 %v324, 4294901760
      %v765 = vsub.f32 %v324, %v764
      %766 = vmatpush1.msra.mxu0 %v765
      %767 = vmatprep.subr.mxu0 0.0
      %v768 = vand.u32 %v325, 4294901760
      %v769 = vsub.f32 %v325, %v768
      %770 = vmatpush1.msra.mxu0 %v769
      %771 = vmatprep.subr.mxu0 0.0
      %v772 = vand.u32 %v326, 4294901760
      %v773 = vsub.f32 %v326, %v772
      %774 = vmatpush1.msra.mxu0 %v773
      %775 = vmatprep.subr.mxu0 0.0
      %v776 = vand.u32 %v327, 4294901760
      %v777 = vsub.f32 %v327, %v776
      %778 = vmatpush1.msra.mxu0 %v777
      %779 = vmatprep.subr.mxu0 0.0
      %v780 = vand.u32 %v328, 4294901760
      %v781 = vsub.f32 %v328, %v780
      %782 = vmatpush1.msra.mxu0 %v781
      %783 = vmatprep.subr.mxu0 0.0
      %v784 = vand.u32 %v329, 4294901760
      %v785 = vsub.f32 %v329, %v784
      %786 = vmatpush1.msra.mxu0 %v785
      %787 = vmatprep.subr.mxu0 0.0
      %v788 = vand.u32 %v330, 4294901760
      %v789 = vsub.f32 %v330, %v788
      %790 = vmatpush1.msra.mxu0 %v789
      %791 = vmatprep.subr.mxu0 0.0
      %v792 = vand.u32 %v331, 4294901760
      %v793 = vsub.f32 %v331, %v792
      %794 = vmatpush1.msra.mxu0 %v793
      %795 = vmatprep.subr.mxu0 0.0
      %v796 = vand.u32 %v332, 4294901760
      %v797 = vsub.f32 %v332, %v796
      %798 = vmatpush1.msra.mxu0 %v797
      %799 = vmatprep.subr.mxu0 0.0
      %v800 = vand.u32 %v333, 4294901760
      %v801 = vsub.f32 %v333, %v800
      %802 = vmatpush1.msra.mxu0 %v801
      %803 = vmatprep.subr.mxu0 0.0
      %v804 = vand.u32 %v334, 4294901760
      %v805 = vsub.f32 %v334, %v804
      %806 = vmatpush1.msra.mxu0 %v805
      %v807 = vand.u32 %v302, 4294901760
      %v808 = vsub.f32 %v302, %v807
      %809 = vmatprep.mubr.f32.mxu0 %v808
      %v810 = vand.u32 %v301, 4294901760
      %v811 = vsub.f32 %v301, %v810
      %812 = vmatmul.mubr.f32.gmra.mrb[0].mxu0 %v811
      %v813 = vpop.f32.mrb[0].mxu0
      %v814 = vadd.f32 %v676, %v813
      %v815 = vpop.f32.mrb[0].mxu0
      %816 = vdwg.mxu0
      %817 = vmatprep.subr.mxu0 0.0
      %v818 = vand.u32 %v303, 4294901760
      %819 = vmatpush1.msra.mxu0 %v818
      %820 = vmatprep.subr.mxu0 0.0
      %v821 = vand.u32 %v304, 4294901760
      %822 = vmatpush1.msra.mxu0 %v821
      %823 = vmatprep.subr.mxu0 0.0
      %v824 = vand.u32 %v305, 4294901760
      %825 = vmatpush1.msra.mxu0 %v824
      %826 = vmatprep.subr.mxu0 0.0
      %v827 = vand.u32 %v306, 4294901760
      %828 = vmatpush1.msra.mxu0 %v827
      %829 = vmatprep.subr.mxu0 0.0
      %v830 = vand.u32 %v307, 4294901760
      %831 = vmatpush1.msra.mxu0 %v830
      %832 = vmatprep.subr.mxu0 0.0
      %v833 = vand.u32 %v308, 4294901760
      %834 = vmatpush1.msra.mxu0 %v833
      %835 = vmatprep.subr.mxu0 0.0
      %v836 = vand.u32 %v309, 4294901760
      %837 = vmatpush1.msra.mxu0 %v836
      %838 = vmatprep.subr.mxu0 0.0
      %v839 = vand.u32 %v310, 4294901760
      %840 = vmatpush1.msra.mxu0 %v839
      %841 = vmatprep.subr.mxu0 0.0
      %v842 = vand.u32 %v311, 4294901760
      %843 = vmatpush1.msra.mxu0 %v842
      %844 = vmatprep.subr.mxu0 0.0
      %v845 = vand.u32 %v312, 4294901760
      %846 = vmatpush1.msra.mxu0 %v845
      %847 = vmatprep.subr.mxu0 0.0
      %v848 = vand.u32 %v313, 4294901760
      %849 = vmatpush1.msra.mxu0 %v848
      %850 = vmatprep.subr.mxu0 0.0
      %v851 = vand.u32 %v314, 4294901760
      %852 = vmatpush1.msra.mxu0 %v851
      %853 = vmatprep.subr.mxu0 0.0
      %v854 = vand.u32 %v315, 4294901760
      %855 = vmatpush1.msra.mxu0 %v854
      %856 = vmatprep.subr.mxu0 0.0
      %v857 = vand.u32 %v316, 4294901760
      %858 = vmatpush1.msra.mxu0 %v857
      %859 = vmatprep.subr.mxu0 0.0
      %v860 = vand.u32 %v317, 4294901760
      %861 = vmatpush1.msra.mxu0 %v860
      %862 = vmatprep.subr.mxu0 0.0
      %v863 = vand.u32 %v318, 4294901760
      %864 = vmatpush1.msra.mxu0 %v863
      %865 = vmatprep.subr.mxu0 0.0
      %v866 = vand.u32 %v319, 4294901760
      %867 = vmatpush1.msra.mxu0 %v866
      %868 = vmatprep.subr.mxu0 0.0
      %v869 = vand.u32 %v320, 4294901760
      %870 = vmatpush1.msra.mxu0 %v869
      %871 = vmatprep.subr.mxu0 0.0
      %v872 = vand.u32 %v321, 4294901760
      %873 = vmatpush1.msra.mxu0 %v872
      %874 = vmatprep.subr.mxu0 0.0
      %v875 = vand.u32 %v322, 4294901760
      %876 = vmatpush1.msra.mxu0 %v875
      %877 = vmatprep.subr.mxu0 0.0
      %v878 = vand.u32 %v323, 4294901760
      %879 = vmatpush1.msra.mxu0 %v878
      %880 = vmatprep.subr.mxu0 0.0
      %v881 = vand.u32 %v324, 4294901760
      %882 = vmatpush1.msra.mxu0 %v881
      %883 = vmatprep.subr.mxu0 0.0
      %v884 = vand.u32 %v325, 4294901760
      %885 = vmatpush1.msra.mxu0 %v884
      %886 = vmatprep.subr.mxu0 0.0
      %v887 = vand.u32 %v326, 4294901760
      %888 = vmatpush1.msra.mxu0 %v887
      %889 = vmatprep.subr.mxu0 0.0
      %v890 = vand.u32 %v327, 4294901760
      %891 = vmatpush1.msra.mxu0 %v890
      %892 = vmatprep.subr.mxu0 0.0
      %v893 = vand.u32 %v328, 4294901760
      %894 = vmatpush1.msra.mxu0 %v893
      %895 = vmatprep.subr.mxu0 0.0
      %v896 = vand.u32 %v329, 4294901760
      %897 = vmatpush1.msra.mxu0 %v896
      %898 = vmatprep.subr.mxu0 0.0
      %v899 = vand.u32 %v330, 4294901760
      %900 = vmatpush1.msra.mxu0 %v899
      %901 = vmatprep.subr.mxu0 0.0
      %v902 = vand.u32 %v331, 4294901760
      %903 = vmatpush1.msra.mxu0 %v902
      %904 = vmatprep.subr.mxu0 0.0
      %v905 = vand.u32 %v332, 4294901760
      %906 = vmatpush1.msra.mxu0 %v905
      %907 = vmatprep.subr.mxu0 0.0
      %v908 = vand.u32 %v333, 4294901760
      %909 = vmatpush1.msra.mxu0 %v908
      %910 = vmatprep.subr.mxu0 0.0
      %v911 = vand.u32 %v334, 4294901760
      %912 = vmatpush1.msra.mxu0 %v911
      %v913 = vand.u32 %v302, 4294901760
      %v914 = vsub.f32 %v302, %v913
      %v915 = vand.u32 %v914, 4294901760
      %916 = vmatprep.mubr.f32.mxu0 %v915
      %v917 = vand.u32 %v301, 4294901760
      %v918 = vsub.f32 %v301, %v917
      %v919 = vand.u32 %v918, 4294901760
      %920 = vmatmul.mubr.f32.gmra.mrb[0].mxu0 %v919
      %v921 = vpop.f32.mrb[0].mxu0
      %v922 = vadd.f32 %v814, %v921
      %v923 = vpop.f32.mrb[0].mxu0
      %924 = vdwg.mxu0
      %925 = vmatprep.subr.mxu0 0.0
      %v926 = vand.u32 %v303, 4294901760
      %v927 = vsub.f32 %v303, %v926
      %v928 = vand.u32 %v927, 4294901760
      %929 = vmatpush1.msra.mxu0 %v928
      %930 = vmatprep.subr.mxu0 0.0
      %v931 = vand.u32 %v304, 4294901760
      %v932 = vsub.f32 %v304, %v931
      %v933 = vand.u32 %v932, 4294901760
      %934 = vmatpush1.msra.mxu0 %v933
      %935 = vmatprep.subr.mxu0 0.0
      %v936 = vand.u32 %v305, 4294901760
      %v937 = vsub.f32 %v305, %v936
      %v938 = vand.u32 %v937, 4294901760
      %939 = vmatpush1.msra.mxu0 %v938
      %940 = vmatprep.subr.mxu0 0.0
      %v941 = vand.u32 %v306, 4294901760
      %v942 = vsub.f32 %v306, %v941
      %v943 = vand.u32 %v942, 4294901760
      %944 = vmatpush1.msra.mxu0 %v943
      %945 = vmatprep.subr.mxu0 0.0
      %v946 = vand.u32 %v307, 4294901760
      %v947 = vsub.f32 %v307, %v946
      %v948 = vand.u32 %v947, 4294901760
      %949 = vmatpush1.msra.mxu0 %v948
      %950 = vmatprep.subr.mxu0 0.0
      %v951 = vand.u32 %v308, 4294901760
      %v952 = vsub.f32 %v308, %v951
      %v953 = vand.u32 %v952, 4294901760
      %954 = vmatpush1.msra.mxu0 %v953
      %955 = vmatprep.subr.mxu0 0.0
      %v956 = vand.u32 %v309, 4294901760
      %v957 = vsub.f32 %v309, %v956
      %v958 = vand.u32 %v957, 4294901760
      %959 = vmatpush1.msra.mxu0 %v958
      %960 = vmatprep.subr.mxu0 0.0
      %v961 = vand.u32 %v310, 4294901760
      %v962 = vsub.f32 %v310, %v961
      %v963 = vand.u32 %v962, 4294901760
      %964 = vmatpush1.msra.mxu0 %v963
      %965 = vmatprep.subr.mxu0 0.0
      %v966 = vand.u32 %v311, 4294901760
      %v967 = vsub.f32 %v311, %v966
      %v968 = vand.u32 %v967, 4294901760
      %969 = vmatpush1.msra.mxu0 %v968
      %970 = vmatprep.subr.mxu0 0.0
      %v971 = vand.u32 %v312, 4294901760
      %v972 = vsub.f32 %v312, %v971
      %v973 = vand.u32 %v972, 4294901760
      %974 = vmatpush1.msra.mxu0 %v973
      %975 = vmatprep.subr.mxu0 0.0
      %v976 = vand.u32 %v313, 4294901760
      %v977 = vsub.f32 %v313, %v976
      %v978 = vand.u32 %v977, 4294901760
      %979 = vmatpush1.msra.mxu0 %v978
      %980 = vmatprep.subr.mxu0 0.0
      %v981 = vand.u32 %v314, 4294901760
      %v982 = vsub.f32 %v314, %v981
      %v983 = vand.u32 %v982, 4294901760
      %984 = vmatpush1.msra.mxu0 %v983
      %985 = vmatprep.subr.mxu0 0.0
      %v986 = vand.u32 %v315, 4294901760
      %v987 = vsub.f32 %v315, %v986
      %v988 = vand.u32 %v987, 4294901760
      %989 = vmatpush1.msra.mxu0 %v988
      %990 = vmatprep.subr.mxu0 0.0
      %v991 = vand.u32 %v316, 4294901760
      %v992 = vsub.f32 %v316, %v991
      %v993 = vand.u32 %v992, 4294901760
      %994 = vmatpush1.msra.mxu0 %v993
      %995 = vmatprep.subr.mxu0 0.0
      %v996 = vand.u32 %v317, 4294901760
      %v997 = vsub.f32 %v317, %v996
      %v998 = vand.u32 %v997, 4294901760
      %999 = vmatpush1.msra.mxu0 %v998
      %1000 = vmatprep.subr.mxu0 0.0
      %v1001 = vand.u32 %v318, 4294901760
      %v1002 = vsub.f32 %v318, %v1001
      %v1003 = vand.u32 %v1002, 4294901760
      %1004 = vmatpush1.msra.mxu0 %v1003
      %1005 = vmatprep.subr.mxu0 0.0
      %v1006 = vand.u32 %v319, 4294901760
      %v1007 = vsub.f32 %v319, %v1006
      %v1008 = vand.u32 %v1007, 4294901760
      %1009 = vmatpush1.msra.mxu0 %v1008
      %1010 = vmatprep.subr.mxu0 0.0
      %v1011 = vand.u32 %v320, 4294901760
      %v1012 = vsub.f32 %v320, %v1011
      %v1013 = vand.u32 %v1012, 4294901760
      %1014 = vmatpush1.msra.mxu0 %v1013
      %1015 = vmatprep.subr.mxu0 0.0
      %v1016 = vand.u32 %v321, 4294901760
      %v1017 = vsub.f32 %v321, %v1016
      %v1018 = vand.u32 %v1017, 4294901760
      %1019 = vmatpush1.msra.mxu0 %v1018
      %1020 = vmatprep.subr.mxu0 0.0
      %v1021 = vand.u32 %v322, 4294901760
      %v1022 = vsub.f32 %v322, %v1021
      %v1023 = vand.u32 %v1022, 4294901760
      %1024 = vmatpush1.msra.mxu0 %v1023
      %1025 = vmatprep.subr.mxu0 0.0
      %v1026 = vand.u32 %v323, 4294901760
      %v1027 = vsub.f32 %v323, %v1026
      %v1028 = vand.u32 %v1027, 4294901760
      %1029 = vmatpush1.msra.mxu0 %v1028
      %1030 = vmatprep.subr.mxu0 0.0
      %v1031 = vand.u32 %v324, 4294901760
      %v1032 = vsub.f32 %v324, %v1031
      %v1033 = vand.u32 %v1032, 4294901760
      %1034 = vmatpush1.msra.mxu0 %v1033
      %1035 = vmatprep.subr.mxu0 0.0
      %v1036 = vand.u32 %v325, 4294901760
      %v1037 = vsub.f32 %v325, %v1036
      %v1038 = vand.u32 %v1037, 4294901760
      %1039 = vmatpush1.msra.mxu0 %v1038
      %1040 = vmatprep.subr.mxu0 0.0
      %v1041 = vand.u32 %v326, 4294901760
      %v1042 = vsub.f32 %v326, %v1041
      %v1043 = vand.u32 %v1042, 4294901760
      %1044 = vmatpush1.msra.mxu0 %v1043
      %1045 = vmatprep.subr.mxu0 0.0
      %v1046 = vand.u32 %v327, 4294901760
      %v1047 = vsub.f32 %v327, %v1046
      %v1048 = vand.u32 %v1047, 4294901760
      %1049 = vmatpush1.msra.mxu0 %v1048
      %1050 = vmatprep.subr.mxu0 0.0
      %v1051 = vand.u32 %v328, 4294901760
      %v1052 = vsub.f32 %v328, %v1051
      %v1053 = vand.u32 %v1052, 4294901760
      %1054 = vmatpush1.msra.mxu0 %v1053
      %1055 = vmatprep.subr.mxu0 0.0
      %v1056 = vand.u32 %v329, 4294901760
      %v1057 = vsub.f32 %v329, %v1056
      %v1058 = vand.u32 %v1057, 4294901760
      %1059 = vmatpush1.msra.mxu0 %v1058
      %1060 = vmatprep.subr.mxu0 0.0
      %v1061 = vand.u32 %v330, 4294901760
      %v1062 = vsub.f32 %v330, %v1061
      %v1063 = vand.u32 %v1062, 4294901760
      %1064 = vmatpush1.msra.mxu0 %v1063
      %1065 = vmatprep.subr.mxu0 0.0
      %v1066 = vand.u32 %v331, 4294901760
      %v1067 = vsub.f32 %v331, %v1066
      %v1068 = vand.u32 %v1067, 4294901760
      %1069 = vmatpush1.msra.mxu0 %v1068
      %1070 = vmatprep.subr.mxu0 0.0
      %v1071 = vand.u32 %v332, 4294901760
      %v1072 = vsub.f32 %v332, %v1071
      %v1073 = vand.u32 %v1072, 4294901760
      %1074 = vmatpush1.msra.mxu0 %v1073
      %1075 = vmatprep.subr.mxu0 0.0
      %v1076 = vand.u32 %v333, 4294901760
      %v1077 = vsub.f32 %v333, %v1076
      %v1078 = vand.u32 %v1077, 4294901760
      %1079 = vmatpush1.msra.mxu0 %v1078
      %1080 = vmatprep.subr.mxu0 0.0
      %v1081 = vand.u32 %v334, 4294901760
      %v1082 = vsub.f32 %v334, %v1081
      %v1083 = vand.u32 %v1082, 4294901760
      %1084 = vmatpush1.msra.mxu0 %v1083
      %v1085 = vand.u32 %v302, 4294901760
      %1086 = vmatprep.mubr.f32.mxu0 %v1085
      %v1087 = vand.u32 %v301, 4294901760
      %1088 = vmatmul.mubr.f32.gmra.mrb[0].mxu0 %v1087
      %v1089 = vpop.f32.mrb[0].mxu0
      %v1090 = vadd.f32 %v922, %v1089
      %v1091 = vpop.f32.mrb[0].mxu0
      %1092 = vdwg.mxu0
      %1093 = vmatprep.subr.mxu0 0.0
      %v1094 = vand.u32 %v303, 4294901760
      %1095 = vmatpush1.msra.mxu0 %v1094
      %1096 = vmatprep.subr.mxu0 0.0
      %v1097 = vand.u32 %v304, 4294901760
      %1098 = vmatpush1.msra.mxu0 %v1097
      %1099 = vmatprep.subr.mxu0 0.0
      %v1100 = vand.u32 %v305, 4294901760
      %1101 = vmatpush1.msra.mxu0 %v1100
      %1102 = vmatprep.subr.mxu0 0.0
      %v1103 = vand.u32 %v306, 4294901760
      %1104 = vmatpush1.msra.mxu0 %v1103
      %1105 = vmatprep.subr.mxu0 0.0
      %v1106 = vand.u32 %v307, 4294901760
      %1107 = vmatpush1.msra.mxu0 %v1106
      %1108 = vmatprep.subr.mxu0 0.0
      %v1109 = vand.u32 %v308, 4294901760
      %1110 = vmatpush1.msra.mxu0 %v1109
      %1111 = vmatprep.subr.mxu0 0.0
      %v1112 = vand.u32 %v309, 4294901760
      %1113 = vmatpush1.msra.mxu0 %v1112
      %1114 = vmatprep.subr.mxu0 0.0
      %v1115 = vand.u32 %v310, 4294901760
      %1116 = vmatpush1.msra.mxu0 %v1115
      %1117 = vmatprep.subr.mxu0 0.0
      %v1118 = vand.u32 %v311, 4294901760
      %1119 = vmatpush1.msra.mxu0 %v1118
      %1120 = vmatprep.subr.mxu0 0.0
      %v1121 = vand.u32 %v312, 4294901760
      %1122 = vmatpush1.msra.mxu0 %v1121
      %1123 = vmatprep.subr.mxu0 0.0
      %v1124 = vand.u32 %v313, 4294901760
      %1125 = vmatpush1.msra.mxu0 %v1124
      %1126 = vmatprep.subr.mxu0 0.0
      %v1127 = vand.u32 %v314, 4294901760
      %1128 = vmatpush1.msra.mxu0 %v1127
      %1129 = vmatprep.subr.mxu0 0.0
      %v1130 = vand.u32 %v315, 4294901760
      %1131 = vmatpush1.msra.mxu0 %v1130
      %1132 = vmatprep.subr.mxu0 0.0
      %v1133 = vand.u32 %v316, 4294901760
      %1134 = vmatpush1.msra.mxu0 %v1133
      %1135 = vmatprep.subr.mxu0 0.0
      %v1136 = vand.u32 %v317, 4294901760
      %1137 = vmatpush1.msra.mxu0 %v1136
      %1138 = vmatprep.subr.mxu0 0.0
      %v1139 = vand.u32 %v318, 4294901760
      %1140 = vmatpush1.msra.mxu0 %v1139
      %1141 = vmatprep.subr.mxu0 0.0
      %v1142 = vand.u32 %v319, 4294901760
      %1143 = vmatpush1.msra.mxu0 %v1142
      %1144 = vmatprep.subr.mxu0 0.0
      %v1145 = vand.u32 %v320, 4294901760
      %1146 = vmatpush1.msra.mxu0 %v1145
      %1147 = vmatprep.subr.mxu0 0.0
      %v1148 = vand.u32 %v321, 4294901760
      %1149 = vmatpush1.msra.mxu0 %v1148
      %1150 = vmatprep.subr.mxu0 0.0
      %v1151 = vand.u32 %v322, 4294901760
      %1152 = vmatpush1.msra.mxu0 %v1151
      %1153 = vmatprep.subr.mxu0 0.0
      %v1154 = vand.u32 %v323, 4294901760
      %1155 = vmatpush1.msra.mxu0 %v1154
      %1156 = vmatprep.subr.mxu0 0.0
      %v1157 = vand.u32 %v324, 4294901760
      %1158 = vmatpush1.msra.mxu0 %v1157
      %1159 = vmatprep.subr.mxu0 0.0
      %v1160 = vand.u32 %v325, 4294901760
      %1161 = vmatpush1.msra.mxu0 %v1160
      %1162 = vmatprep.subr.mxu0 0.0
      %v1163 = vand.u32 %v326, 4294901760
      %1164 = vmatpush1.msra.mxu0 %v1163
      %1165 = vmatprep.subr.mxu0 0.0
      %v1166 = vand.u32 %v327, 4294901760
      %1167 = vmatpush1.msra.mxu0 %v1166
      %1168 = vmatprep.subr.mxu0 0.0
      %v1169 = vand.u32 %v328, 4294901760
      %1170 = vmatpush1.msra.mxu0 %v1169
      %1171 = vmatprep.subr.mxu0 0.0
      %v1172 = vand.u32 %v329, 4294901760
      %1173 = vmatpush1.msra.mxu0 %v1172
      %1174 = vmatprep.subr.mxu0 0.0
      %v1175 = vand.u32 %v330, 4294901760
      %1176 = vmatpush1.msra.mxu0 %v1175
      %1177 = vmatprep.subr.mxu0 0.0
      %v1178 = vand.u32 %v331, 4294901760
      %1179 = vmatpush1.msra.mxu0 %v1178
      %1180 = vmatprep.subr.mxu0 0.0
      %v1181 = vand.u32 %v332, 4294901760
      %1182 = vmatpush1.msra.mxu0 %v1181
      %1183 = vmatprep.subr.mxu0 0.0
      %v1184 = vand.u32 %v333, 4294901760
      %1185 = vmatpush1.msra.mxu0 %v1184
      %1186 = vmatprep.subr.mxu0 0.0
      %v1187 = vand.u32 %v334, 4294901760
      %1188 = vmatpush1.msra.mxu0 %v1187
      %v1189 = vand.u32 %v302, 4294901760
      %1190 = vmatprep.mubr.f32.mxu0 %v1189
      %v1191 = vand.u32 %v301, 4294901760
      %1192 = vmatmul.mubr.f32.gmra.mrb[0].mxu0 %v1191
      %v1193 = vpop.f32.mrb[0].mxu0
      %v1194 = vadd.f32 %v1090, %v1193
      %v1195 = vpop.f32.mrb[0].mxu0
      %1196 = vdwg.mxu0
      %vm1197 = vcmask 64512
      %v1198 = vsel %vm1197, %v1194, -inf
      %1199 = vmax.xlane.f32.xlu0 %v1198
      %v1200 = vpop.xlane.xlu0 %1199
      %v1201 = vsub.f32 %v1194, %v1200
      %v1202 = vmul.f32 %v1201, 1.442695
      %v1203 = vpow.pop %v1202
      %v1204 = vsel %vm1197, %v1203, 0.0
      %1205 = vadd.xlane.f32.xlu0 %v1204
      %v1206 = vpop.xlane.xlu0 %1205
      %v1207 = vrcp.pop %v1206
      %v1208 = vmul.f32 %v1203, %v1207
      %v1209 = vld [vmem:[%s2] sm:$0xff]
      %v1211 = vsel %vm1197, %v1209, 0
      %1213 = vmatprep.subr.mxu0 0.0
      %v1214 = vand.u32 %v1208, 4294901760
      %1215 = vmatpush1.msra.mxu0 %v1214
      %1216 = vmatprep.subr.mxu0 0.0
      %1217 = vmatpush1.msra.mxu0 0.0
      %1218 = vmatprep.subr.mxu0 0.0
      %1219 = vmatpush1.msra.mxu0 0.0
      %1220 = vmatprep.subr.mxu0 0.0
      %1221 = vmatpush1.msra.mxu0 0.0
      %1222 = vmatprep.subr.mxu0 0.0
      %1223 = vmatpush1.msra.mxu0 0.0
      %1224 = vmatprep.subr.mxu0 0.0
      %1225 = vmatpush1.msra.mxu0 0.0
      %1226 = vmatprep.subr.mxu0 0.0
      %1227 = vmatpush1.msra.mxu0 0.0
      %1228 = vmatprep.subr.mxu0 0.0
      %1229 = vmatpush1.msra.mxu0 0.0
      %1230 = vmatprep.subr.mxu0 0.0
      %1231 = vmatpush1.msra.mxu0 0.0
      %1232 = vmatprep.subr.mxu0 0.0
      %1233 = vmatpush1.msra.mxu0 0.0
      %1234 = vmatprep.subr.mxu0 0.0
      %1235 = vmatpush1.msra.mxu0 0.0
      %1236 = vmatprep.subr.mxu0 0.0
      %1237 = vmatpush1.msra.mxu0 0.0
      %1238 = vmatprep.subr.mxu0 0.0
      %1239 = vmatpush1.msra.mxu0 0.0
      %1240 = vmatprep.subr.mxu0 0.0
      %1241 = vmatpush1.msra.mxu0 0.0
      %1242 = vmatprep.subr.mxu0 0.0
      %1243 = vmatpush1.msra.mxu0 0.0
      %1244 = vmatprep.subr.mxu0 0.0
      %1245 = vmatpush1.msra.mxu0 0.0
      %1246 = vmatprep.subr.mxu0 0.0
      %1247 = vmatpush1.msra.mxu0 0.0
      %1248 = vmatprep.subr.mxu0 0.0
      %1249 = vmatpush1.msra.mxu0 0.0
      %1250 = vmatprep.subr.mxu0 0.0
      %1251 = vmatpush1.msra.mxu0 0.0
      %1252 = vmatprep.subr.mxu0 0.0
      %1253 = vmatpush1.msra.mxu0 0.0
      %1254 = vmatprep.subr.mxu0 0.0
      %1255 = vmatpush1.msra.mxu0 0.0
      %1256 = vmatprep.subr.mxu0 0.0
      %1257 = vmatpush1.msra.mxu0 0.0
      %1258 = vmatprep.subr.mxu0 0.0
      %1259 = vmatpush1.msra.mxu0 0.0
      %1260 = vmatprep.subr.mxu0 0.0
      %1261 = vmatpush1.msra.mxu0 0.0
      %1262 = vmatprep.subr.mxu0 0.0
      %1263 = vmatpush1.msra.mxu0 0.0
      %1264 = vmatprep.subr.mxu0 0.0
      %1265 = vmatpush1.msra.mxu0 0.0
      %1266 = vmatprep.subr.mxu0 0.0
      %1267 = vmatpush1.msra.mxu0 0.0
      %1268 = vmatprep.subr.mxu0 0.0
      %1269 = vmatpush1.msra.mxu0 0.0
      %1270 = vmatprep.subr.mxu0 0.0
      %1271 = vmatpush1.msra.mxu0 0.0
      %1272 = vmatprep.subr.mxu0 0.0
      %1273 = vmatpush1.msra.mxu0 0.0
      %1274 = vmatprep.subr.mxu0 0.0
      %1275 = vmatpush1.msra.mxu0 0.0
      %1276 = vmatprep.subr.mxu0 0.0
      %1277 = vmatpush1.msra.mxu0 0.0
      %1278 = vmatprep.mubr.f32.mxu0 0.0
      %v1279 = vand.u32 %v1211, 4294901760
      %v1280 = vsub.f32 %v1211, %v1279
      %v1281 = vand.u32 %v1280, 4294901760
      %v1282 = vsub.f32 %v1280, %v1281
      %v1283 = vand.u32 %v1282, 4294901760
      %1284 = vmatmul.mubr.f32.gmra.mrb[0].mxu0 %v1283
      %v1285 = vpop.f32.mrb[0].mxu0
      %v1286 = vadd.f32 0.0, %v1285
      %v1287 = vpop.f32.mrb[0].mxu0
      %1288 = vdwg.mxu0
      %1289 = vmatprep.subr.mxu0 0.0
      %v1290 = vand.u32 %v1208, 4294901760
      %v1291 = vsub.f32 %v1208, %v1290
      %v1292 = vand.u32 %v1291, 4294901760
      %v1293 = vsub.f32 %v1291, %v1292
      %v1294 = vand.u32 %v1293, 4294901760
      %1295 = vmatpush1.msra.mxu0 %v1294
      %1296 = vmatprep.subr.mxu0 0.0
      %1297 = vmatpush1.msra.mxu0 0.0
      %1298 = vmatprep.subr.mxu0 0.0
      %1299 = vmatpush1.msra.mxu0 0.0
      %1300 = vmatprep.subr.mxu0 0.0
      %1301 = vmatpush1.msra.mxu0 0.0
      %1302 = vmatprep.subr.mxu0 0.0
      %1303 = vmatpush1.msra.mxu0 0.0
      %1304 = vmatprep.subr.mxu0 0.0
      %1305 = vmatpush1.msra.mxu0 0.0
      %1306 = vmatprep.subr.mxu0 0.0
      %1307 = vmatpush1.msra.mxu0 0.0
      %1308 = vmatprep.subr.mxu0 0.0
      %1309 = vmatpush1.msra.mxu0 0.0
      %1310 = vmatprep.subr.mxu0 0.0
      %1311 = vmatpush1.msra.mxu0 0.0
      %1312 = vmatprep.subr.mxu0 0.0
      %1313 = vmatpush1.msra.mxu0 0.0
      %1314 = vmatprep.subr.mxu0 0.0
      %1315 = vmatpush1.msra.mxu0 0.0
      %1316 = vmatprep.subr.mxu0 0.0
      %1317 = vmatpush1.msra.mxu0 0.0
      %1318 = vmatprep.subr.mxu0 0.0
      %1319 = vmatpush1.msra.mxu0 0.0
      %1320 = vmatprep.subr.mxu0 0.0
      %1321 = vmatpush1.msra.mxu0 0.0
      %1322 = vmatprep.subr.mxu0 0.0
      %1323 = vmatpush1.msra.mxu0 0.0
      %1324 = vmatprep.subr.mxu0 0.0
      %1325 = vmatpush1.msra.mxu0 0.0
      %1326 = vmatprep.subr.mxu0 0.0
      %1327 = vmatpush1.msra.mxu0 0.0
      %1328 = vmatprep.subr.mxu0 0.0
      %1329 = vmatpush1.msra.mxu0 0.0
      %1330 = vmatprep.subr.mxu0 0.0
      %1331 = vmatpush1.msra.mxu0 0.0
      %1332 = vmatprep.subr.mxu0 0.0
      %1333 = vmatpush1.msra.mxu0 0.0
      %1334 = vmatprep.subr.mxu0 0.0
      %1335 = vmatpush1.msra.mxu0 0.0
      %1336 = vmatprep.subr.mxu0 0.0
      %1337 = vmatpush1.msra.mxu0 0.0
      %1338 = vmatprep.subr.mxu0 0.0
      %1339 = vmatpush1.msra.mxu0 0.0
      %1340 = vmatprep.subr.mxu0 0.0
      %1341 = vmatpush1.msra.mxu0 0.0
      %1342 = vmatprep.subr.mxu0 0.0
      %1343 = vmatpush1.msra.mxu0 0.0
      %1344 = vmatprep.subr.mxu0 0.0
      %1345 = vmatpush1.msra.mxu0 0.0
      %1346 = vmatprep.subr.mxu0 0.0
      %1347 = vmatpush1.msra.mxu0 0.0
      %1348 = vmatprep.subr.mxu0 0.0
      %1349 = vmatpush1.msra.mxu0 0.0
      %1350 = vmatprep.subr.mxu0 0.0
      %1351 = vmatpush1.msra.mxu0 0.0
      %1352 = vmatprep.subr.mxu0 0.0
      %1353 = vmatpush1.msra.mxu0 0.0
      %1354 = vmatprep.subr.mxu0 0.0
      %1355 = vmatpush1.msra.mxu0 0.0
      %1356 = vmatprep.subr.mxu0 0.0
      %1357 = vmatpush1.msra.mxu0 0.0
      %1358 = vmatprep.mubr.f32.mxu0 0.0
      %v1359 = vand.u32 %v1211, 4294901760
      %1360 = vmatmul.mubr.f32.gmra.mrb[0].mxu0 %v1359
      %v1361 = vpop.f32.mrb[0].mxu0
      %v1362 = vadd.f32 %v1286, %v1361
      %v1363 = vpop.f32.mrb[0].mxu0
      %1364 = vdwg.mxu0
      %1365 = vmatprep.subr.mxu0 0.0
      %v1366 = vand.u32 %v1208, 4294901760
      %v1367 = vsub.f32 %v1208, %v1366
      %1368 = vmatpush1.msra.mxu0 %v1367
      %1369 = vmatprep.subr.mxu0 0.0
      %1370 = vmatpush1.msra.mxu0 0.0
      %1371 = vmatprep.subr.mxu0 0.0
      %1372 = vmatpush1.msra.mxu0 0.0
      %1373 = vmatprep.subr.mxu0 0.0
      %1374 = vmatpush1.msra.mxu0 0.0
      %1375 = vmatprep.subr.mxu0 0.0
      %1376 = vmatpush1.msra.mxu0 0.0
      %1377 = vmatprep.subr.mxu0 0.0
      %1378 = vmatpush1.msra.mxu0 0.0
      %1379 = vmatprep.subr.mxu0 0.0
      %1380 = vmatpush1.msra.mxu0 0.0
      %1381 = vmatprep.subr.mxu0 0.0
      %1382 = vmatpush1.msra.mxu0 0.0
      %1383 = vmatprep.subr.mxu0 0.0
      %1384 = vmatpush1.msra.mxu0 0.0
      %1385 = vmatprep.subr.mxu0 0.0
      %1386 = vmatpush1.msra.mxu0 0.0
      %1387 = vmatprep.subr.mxu0 0.0
      %1388 = vmatpush1.msra.mxu0 0.0
      %1389 = vmatprep.subr.mxu0 0.0
      %1390 = vmatpush1.msra.mxu0 0.0
      %1391 = vmatprep.subr.mxu0 0.0
      %1392 = vmatpush1.msra.mxu0 0.0
      %1393 = vmatprep.subr.mxu0 0.0
      %1394 = vmatpush1.msra.mxu0 0.0
      %1395 = vmatprep.subr.mxu0 0.0
      %1396 = vmatpush1.msra.mxu0 0.0
      %1397 = vmatprep.subr.mxu0 0.0
      %1398 = vmatpush1.msra.mxu0 0.0
      %1399 = vmatprep.subr.mxu0 0.0
      %1400 = vmatpush1.msra.mxu0 0.0
      %1401 = vmatprep.subr.mxu0 0.0
      %1402 = vmatpush1.msra.mxu0 0.0
      %1403 = vmatprep.subr.mxu0 0.0
      %1404 = vmatpush1.msra.mxu0 0.0
      %1405 = vmatprep.subr.mxu0 0.0
      %1406 = vmatpush1.msra.mxu0 0.0
      %1407 = vmatprep.subr.mxu0 0.0
      %1408 = vmatpush1.msra.mxu0 0.0
      %1409 = vmatprep.subr.mxu0 0.0
      %1410 = vmatpush1.msra.mxu0 0.0
      %1411 = vmatprep.subr.mxu0 0.0
      %1412 = vmatpush1.msra.mxu0 0.0
      %1413 = vmatprep.subr.mxu0 0.0
      %1414 = vmatpush1.msra.mxu0 0.0
      %1415 = vmatprep.subr.mxu0 0.0
      %1416 = vmatpush1.msra.mxu0 0.0
      %1417 = vmatprep.subr.mxu0 0.0
      %1418 = vmatpush1.msra.mxu0 0.0
      %1419 = vmatprep.subr.mxu0 0.0
      %1420 = vmatpush1.msra.mxu0 0.0
      %1421 = vmatprep.subr.mxu0 0.0
      %1422 = vmatpush1.msra.mxu0 0.0
      %1423 = vmatprep.subr.mxu0 0.0
      %1424 = vmatpush1.msra.mxu0 0.0
      %1425 = vmatprep.subr.mxu0 0.0
      %1426 = vmatpush1.msra.mxu0 0.0
      %1427 = vmatprep.subr.mxu0 0.0
      %1428 = vmatpush1.msra.mxu0 0.0
      %1429 = vmatprep.subr.mxu0 0.0
      %1430 = vmatpush1.msra.mxu0 0.0
      %1431 = vmatprep.mubr.f32.mxu0 0.0
      %v1432 = vand.u32 %v1211, 4294901760
      %v1433 = vsub.f32 %v1211, %v1432
      %1434 = vmatmul.mubr.f32.gmra.mrb[0].mxu0 %v1433
      %v1435 = vpop.f32.mrb[0].mxu0
      %v1436 = vadd.f32 %v1362, %v1435
      %v1437 = vpop.f32.mrb[0].mxu0
      %1438 = vdwg.mxu0
      %1439 = vmatprep.subr.mxu0 0.0
      %v1440 = vand.u32 %v1208, 4294901760
      %1441 = vmatpush1.msra.mxu0 %v1440
      %1442 = vmatprep.subr.mxu0 0.0
      %1443 = vmatpush1.msra.mxu0 0.0
      %1444 = vmatprep.subr.mxu0 0.0
      %1445 = vmatpush1.msra.mxu0 0.0
      %1446 = vmatprep.subr.mxu0 0.0
      %1447 = vmatpush1.msra.mxu0 0.0
      %1448 = vmatprep.subr.mxu0 0.0
      %1449 = vmatpush1.msra.mxu0 0.0
      %1450 = vmatprep.subr.mxu0 0.0
      %1451 = vmatpush1.msra.mxu0 0.0
      %1452 = vmatprep.subr.mxu0 0.0
      %1453 = vmatpush1.msra.mxu0 0.0
      %1454 = vmatprep.subr.mxu0 0.0
      %1455 = vmatpush1.msra.mxu0 0.0
      %1456 = vmatprep.subr.mxu0 0.0
      %1457 = vmatpush1.msra.mxu0 0.0
      %1458 = vmatprep.subr.mxu0 0.0
      %1459 = vmatpush1.msra.mxu0 0.0
      %1460 = vmatprep.subr.mxu0 0.0
      %1461 = vmatpush1.msra.mxu0 0.0
      %1462 = vmatprep.subr.mxu0 0.0
      %1463 = vmatpush1.msra.mxu0 0.0
      %1464 = vmatprep.subr.mxu0 0.0
      %1465 = vmatpush1.msra.mxu0 0.0
      %1466 = vmatprep.subr.mxu0 0.0
      %1467 = vmatpush1.msra.mxu0 0.0
      %1468 = vmatprep.subr.mxu0 0.0
      %1469 = vmatpush1.msra.mxu0 0.0
      %1470 = vmatprep.subr.mxu0 0.0
      %1471 = vmatpush1.msra.mxu0 0.0
      %1472 = vmatprep.subr.mxu0 0.0
      %1473 = vmatpush1.msra.mxu0 0.0
      %1474 = vmatprep.subr.mxu0 0.0
      %1475 = vmatpush1.msra.mxu0 0.0
      %1476 = vmatprep.subr.mxu0 0.0
      %1477 = vmatpush1.msra.mxu0 0.0
      %1478 = vmatprep.subr.mxu0 0.0
      %1479 = vmatpush1.msra.mxu0 0.0
      %1480 = vmatprep.subr.mxu0 0.0
      %1481 = vmatpush1.msra.mxu0 0.0
      %1482 = vmatprep.subr.mxu0 0.0
      %1483 = vmatpush1.msra.mxu0 0.0
      %1484 = vmatprep.subr.mxu0 0.0
      %1485 = vmatpush1.msra.mxu0 0.0
      %1486 = vmatprep.subr.mxu0 0.0
      %1487 = vmatpush1.msra.mxu0 0.0
      %1488 = vmatprep.subr.mxu0 0.0
      %1489 = vmatpush1.msra.mxu0 0.0
      %1490 = vmatprep.subr.mxu0 0.0
      %1491 = vmatpush1.msra.mxu0 0.0
      %1492 = vmatprep.subr.mxu0 0.0
      %1493 = vmatpush1.msra.mxu0 0.0
      %1494 = vmatprep.subr.mxu0 0.0
      %1495 = vmatpush1.msra.mxu0 0.0
      %1496 = vmatprep.subr.mxu0 0.0
      %1497 = vmatpush1.msra.mxu0 0.0
      %1498 = vmatprep.subr.mxu0 0.0
      %1499 = vmatpush1.msra.mxu0 0.0
      %1500 = vmatprep.subr.mxu0 0.0
      %1501 = vmatpush1.msra.mxu0 0.0
      %1502 = vmatprep.subr.mxu0 0.0
      %1503 = vmatpush1.msra.mxu0 0.0
      %1504 = vmatprep.mubr.f32.mxu0 0.0
      %v1505 = vand.u32 %v1211, 4294901760
      %v1506 = vsub.f32 %v1211, %v1505
      %v1507 = vand.u32 %v1506, 4294901760
      %1508 = vmatmul.mubr.f32.gmra.mrb[0].mxu0 %v1507
      %v1509 = vpop.f32.mrb[0].mxu0
      %v1510 = vadd.f32 %v1436, %v1509
      %v1511 = vpop.f32.mrb[0].mxu0
      %1512 = vdwg.mxu0
      %1513 = vmatprep.subr.mxu0 0.0
      %v1514 = vand.u32 %v1208, 4294901760
      %v1515 = vsub.f32 %v1208, %v1514
      %v1516 = vand.u32 %v1515, 4294901760
      %1517 = vmatpush1.msra.mxu0 %v1516
      %1518 = vmatprep.subr.mxu0 0.0
      %1519 = vmatpush1.msra.mxu0 0.0
      %1520 = vmatprep.subr.mxu0 0.0
      %1521 = vmatpush1.msra.mxu0 0.0
      %1522 = vmatprep.subr.mxu0 0.0
      %1523 = vmatpush1.msra.mxu0 0.0
      %1524 = vmatprep.subr.mxu0 0.0
      %1525 = vmatpush1.msra.mxu0 0.0
      %1526 = vmatprep.subr.mxu0 0.0
      %1527 = vmatpush1.msra.mxu0 0.0
      %1528 = vmatprep.subr.mxu0 0.0
      %1529 = vmatpush1.msra.mxu0 0.0
      %1530 = vmatprep.subr.mxu0 0.0
      %1531 = vmatpush1.msra.mxu0 0.0
      %1532 = vmatprep.subr.mxu0 0.0
      %1533 = vmatpush1.msra.mxu0 0.0
      %1534 = vmatprep.subr.mxu0 0.0
      %1535 = vmatpush1.msra.mxu0 0.0
      %1536 = vmatprep.subr.mxu0 0.0
      %1537 = vmatpush1.msra.mxu0 0.0
      %1538 = vmatprep.subr.mxu0 0.0
      %1539 = vmatpush1.msra.mxu0 0.0
      %1540 = vmatprep.subr.mxu0 0.0
      %1541 = vmatpush1.msra.mxu0 0.0
      %1542 = vmatprep.subr.mxu0 0.0
      %1543 = vmatpush1.msra.mxu0 0.0
      %1544 = vmatprep.subr.mxu0 0.0
      %1545 = vmatpush1.msra.mxu0 0.0
      %1546 = vmatprep.subr.mxu0 0.0
      %1547 = vmatpush1.msra.mxu0 0.0
      %1548 = vmatprep.subr.mxu0 0.0
      %1549 = vmatpush1.msra.mxu0 0.0
      %1550 = vmatprep.subr.mxu0 0.0
      %1551 = vmatpush1.msra.mxu0 0.0
      %1552 = vmatprep.subr.mxu0 0.0
      %1553 = vmatpush1.msra.mxu0 0.0
      %1554 = vmatprep.subr.mxu0 0.0
      %1555 = vmatpush1.msra.mxu0 0.0
      %1556 = vmatprep.subr.mxu0 0.0
      %1557 = vmatpush1.msra.mxu0 0.0
      %1558 = vmatprep.subr.mxu0 0.0
      %1559 = vmatpush1.msra.mxu0 0.0
      %1560 = vmatprep.subr.mxu0 0.0
      %1561 = vmatpush1.msra.mxu0 0.0
      %1562 = vmatprep.subr.mxu0 0.0
      %1563 = vmatpush1.msra.mxu0 0.0
      %1564 = vmatprep.subr.mxu0 0.0
      %1565 = vmatpush1.msra.mxu0 0.0
      %1566 = vmatprep.subr.mxu0 0.0
      %1567 = vmatpush1.msra.mxu0 0.0
      %1568 = vmatprep.subr.mxu0 0.0
      %1569 = vmatpush1.msra.mxu0 0.0
      %1570 = vmatprep.subr.mxu0 0.0
      %1571 = vmatpush1.msra.mxu0 0.0
      %1572 = vmatprep.subr.mxu0 0.0
      %1573 = vmatpush1.msra.mxu0 0.0
      %1574 = vmatprep.subr.mxu0 0.0
      %1575 = vmatpush1.msra.mxu0 0.0
      %1576 = vmatprep.subr.mxu0 0.0
      %1577 = vmatpush1.msra.mxu0 0.0
      %1578 = vmatprep.subr.mxu0 0.0
      %1579 = vmatpush1.msra.mxu0 0.0
      %1580 = vmatprep.mubr.f32.mxu0 0.0
      %v1581 = vand.u32 %v1211, 4294901760
      %1582 = vmatmul.mubr.f32.gmra.mrb[0].mxu0 %v1581
      %v1583 = vpop.f32.mrb[0].mxu0
      %v1584 = vadd.f32 %v1510, %v1583
      %v1585 = vpop.f32.mrb[0].mxu0
      %1586 = vdwg.mxu0
      %1587 = vmatprep.subr.mxu0 0.0
      %v1588 = vand.u32 %v1208, 4294901760
      %1589 = vmatpush1.msra.mxu0 %v1588
      %1590 = vmatprep.subr.mxu0 0.0
      %1591 = vmatpush1.msra.mxu0 0.0
      %1592 = vmatprep.subr.mxu0 0.0
      %1593 = vmatpush1.msra.mxu0 0.0
      %1594 = vmatprep.subr.mxu0 0.0
      %1595 = vmatpush1.msra.mxu0 0.0
      %1596 = vmatprep.subr.mxu0 0.0
      %1597 = vmatpush1.msra.mxu0 0.0
      %1598 = vmatprep.subr.mxu0 0.0
      %1599 = vmatpush1.msra.mxu0 0.0
      %1600 = vmatprep.subr.mxu0 0.0
      %1601 = vmatpush1.msra.mxu0 0.0
      %1602 = vmatprep.subr.mxu0 0.0
      %1603 = vmatpush1.msra.mxu0 0.0
      %1604 = vmatprep.subr.mxu0 0.0
      %1605 = vmatpush1.msra.mxu0 0.0
      %1606 = vmatprep.subr.mxu0 0.0
      %1607 = vmatpush1.msra.mxu0 0.0
      %1608 = vmatprep.subr.mxu0 0.0
      %1609 = vmatpush1.msra.mxu0 0.0
      %1610 = vmatprep.subr.mxu0 0.0
      %1611 = vmatpush1.msra.mxu0 0.0
      %1612 = vmatprep.subr.mxu0 0.0
      %1613 = vmatpush1.msra.mxu0 0.0
      %1614 = vmatprep.subr.mxu0 0.0
      %1615 = vmatpush1.msra.mxu0 0.0
      %1616 = vmatprep.subr.mxu0 0.0
      %1617 = vmatpush1.msra.mxu0 0.0
      %1618 = vmatprep.subr.mxu0 0.0
      %1619 = vmatpush1.msra.mxu0 0.0
      %1620 = vmatprep.subr.mxu0 0.0
      %1621 = vmatpush1.msra.mxu0 0.0
      %1622 = vmatprep.subr.mxu0 0.0
      %1623 = vmatpush1.msra.mxu0 0.0
      %1624 = vmatprep.subr.mxu0 0.0
      %1625 = vmatpush1.msra.mxu0 0.0
      %1626 = vmatprep.subr.mxu0 0.0
      %1627 = vmatpush1.msra.mxu0 0.0
      %1628 = vmatprep.subr.mxu0 0.0
      %1629 = vmatpush1.msra.mxu0 0.0
      %1630 = vmatprep.subr.mxu0 0.0
      %1631 = vmatpush1.msra.mxu0 0.0
      %1632 = vmatprep.subr.mxu0 0.0
      %1633 = vmatpush1.msra.mxu0 0.0
      %1634 = vmatprep.subr.mxu0 0.0
      %1635 = vmatpush1.msra.mxu0 0.0
      %1636 = vmatprep.subr.mxu0 0.0
      %1637 = vmatpush1.msra.mxu0 0.0
      %1638 = vmatprep.subr.mxu0 0.0
      %1639 = vmatpush1.msra.mxu0 0.0
      %1640 = vmatprep.subr.mxu0 0.0
      %1641 = vmatpush1.msra.mxu0 0.0
      %1642 = vmatprep.subr.mxu0 0.0
      %1643 = vmatpush1.msra.mxu0 0.0
      %1644 = vmatprep.subr.mxu0 0.0
      %1645 = vmatpush1.msra.mxu0 0.0
      %1646 = vmatprep.subr.mxu0 0.0
      %1647 = vmatpush1.msra.mxu0 0.0
      %1648 = vmatprep.subr.mxu0 0.0
      %1649 = vmatpush1.msra.mxu0 0.0
      %1650 = vmatprep.subr.mxu0 0.0
      %1651 = vmatpush1.msra.mxu0 0.0
      %1652 = vmatprep.mubr.f32.mxu0 0.0
      %v1653 = vand.u32 %v1211, 4294901760
      %1654 = vmatmul.mubr.f32.gmra.mrb[0].mxu0 %v1653
      %v1655 = vpop.f32.mrb[0].mxu0
      %v1656 = vadd.f32 %v1584, %v1655
      %v1657 = vpop.f32.mrb[0].mxu0
      %1658 = vdwg.mxu0
      %v1660 = vsel %vm1197, %v1656, 0
      %v1662 = vand.u32 %v302, 4294901760
      %1663 = vmatprep.subr.mxu0 %v1662
      %v1664 = vand.u32 %v301, 4294901760
      %1665 = vmatpush1.msra.mxu0 %v1664
      %1666 = vmatprep.subr.mxu0 0.0
      %1667 = vmatpush1.msra.mxu0 0.0
      %1668 = vmatprep.subr.mxu0 0.0
      %1669 = vmatpush1.msra.mxu0 0.0
      %1670 = vmatprep.subr.mxu0 0.0
      %1671 = vmatpush1.msra.mxu0 0.0
      %1672 = vmatprep.subr.mxu0 0.0
      %1673 = vmatpush1.msra.mxu0 0.0
      %1674 = vmatprep.subr.mxu0 0.0
      %1675 = vmatpush1.msra.mxu0 0.0
      %1676 = vmatprep.subr.mxu0 0.0
      %1677 = vmatpush1.msra.mxu0 0.0
      %1678 = vmatprep.subr.mxu0 0.0
      %1679 = vmatpush1.msra.mxu0 0.0
      %1680 = vmatprep.subr.mxu0 0.0
      %1681 = vmatpush1.msra.mxu0 0.0
      %1682 = vmatprep.subr.mxu0 0.0
      %1683 = vmatpush1.msra.mxu0 0.0
      %1684 = vmatprep.subr.mxu0 0.0
      %1685 = vmatpush1.msra.mxu0 0.0
      %1686 = vmatprep.subr.mxu0 0.0
      %1687 = vmatpush1.msra.mxu0 0.0
      %1688 = vmatprep.subr.mxu0 0.0
      %1689 = vmatpush1.msra.mxu0 0.0
      %1690 = vmatprep.subr.mxu0 0.0
      %1691 = vmatpush1.msra.mxu0 0.0
      %1692 = vmatprep.subr.mxu0 0.0
      %1693 = vmatpush1.msra.mxu0 0.0
      %1694 = vmatprep.subr.mxu0 0.0
      %1695 = vmatpush1.msra.mxu0 0.0
      %1696 = vmatprep.subr.mxu0 0.0
      %1697 = vmatpush1.msra.mxu0 0.0
      %1698 = vmatprep.subr.mxu0 0.0
      %1699 = vmatpush1.msra.mxu0 0.0
      %1700 = vmatprep.subr.mxu0 0.0
      %1701 = vmatpush1.msra.mxu0 0.0
      %1702 = vmatprep.subr.mxu0 0.0
      %1703 = vmatpush1.msra.mxu0 0.0
      %1704 = vmatprep.subr.mxu0 0.0
      %1705 = vmatpush1.msra.mxu0 0.0
      %1706 = vmatprep.subr.mxu0 0.0
      %1707 = vmatpush1.msra.mxu0 0.0
      %1708 = vmatprep.subr.mxu0 0.0
      %1709 = vmatpush1.msra.mxu0 0.0
      %1710 = vmatprep.subr.mxu0 0.0
      %1711 = vmatpush1.msra.mxu0 0.0
      %1712 = vmatprep.subr.mxu0 0.0
      %1713 = vmatpush1.msra.mxu0 0.0
      %1714 = vmatprep.subr.mxu0 0.0
      %1715 = vmatpush1.msra.mxu0 0.0
      %1716 = vmatprep.subr.mxu0 0.0
      %1717 = vmatpush1.msra.mxu0 0.0
      %1718 = vmatprep.subr.mxu0 0.0
      %1719 = vmatpush1.msra.mxu0 0.0
      %1720 = vmatprep.subr.mxu0 0.0
      %1721 = vmatpush1.msra.mxu0 0.0
      %1722 = vmatprep.subr.mxu0 0.0
      %1723 = vmatpush1.msra.mxu0 0.0
      %1724 = vmatprep.subr.mxu0 0.0
      %1725 = vmatpush1.msra.mxu0 0.0
      %1726 = vmatprep.subr.mxu0 0.0
      %1727 = vmatpush1.msra.mxu0 0.0
      %1728 = vmatprep.mubr.f32.mxu0 0.0
      %v1729 = vand.u32 %v1660, 4294901760
      %v1730 = vsub.f32 %v1660, %v1729
      %v1731 = vand.u32 %v1730, 4294901760
      %v1732 = vsub.f32 %v1730, %v1731
      %v1733 = vand.u32 %v1732, 4294901760
      %1734 = vmatmul.mubr.f32.gmra.mrb[0].mxu0 %v1733
      %v1735 = vpop.f32.mrb[0].mxu0
      %v1736 = vadd.f32 0.0, %v1735
      %v1737 = vpop.f32.mrb[0].mxu0
      %v1738 = vadd.f32 0.0, %v1737
      %1739 = vdwg.mxu0
      %v1740 = vand.u32 %v302, 4294901760
      %v1741 = vsub.f32 %v302, %v1740
      %v1742 = vand.u32 %v1741, 4294901760
      %v1743 = vsub.f32 %v1741, %v1742
      %v1744 = vand.u32 %v1743, 4294901760
      %1745 = vmatprep.subr.mxu0 %v1744
      %v1746 = vand.u32 %v301, 4294901760
      %v1747 = vsub.f32 %v301, %v1746
      %v1748 = vand.u32 %v1747, 4294901760
      %v1749 = vsub.f32 %v1747, %v1748
      %v1750 = vand.u32 %v1749, 4294901760
      %1751 = vmatpush1.msra.mxu0 %v1750
      %1752 = vmatprep.subr.mxu0 0.0
      %1753 = vmatpush1.msra.mxu0 0.0
      %1754 = vmatprep.subr.mxu0 0.0
      %1755 = vmatpush1.msra.mxu0 0.0
      %1756 = vmatprep.subr.mxu0 0.0
      %1757 = vmatpush1.msra.mxu0 0.0
      %1758 = vmatprep.subr.mxu0 0.0
      %1759 = vmatpush1.msra.mxu0 0.0
      %1760 = vmatprep.subr.mxu0 0.0
      %1761 = vmatpush1.msra.mxu0 0.0
      %1762 = vmatprep.subr.mxu0 0.0
      %1763 = vmatpush1.msra.mxu0 0.0
      %1764 = vmatprep.subr.mxu0 0.0
      %1765 = vmatpush1.msra.mxu0 0.0
      %1766 = vmatprep.subr.mxu0 0.0
      %1767 = vmatpush1.msra.mxu0 0.0
      %1768 = vmatprep.subr.mxu0 0.0
      %1769 = vmatpush1.msra.mxu0 0.0
      %1770 = vmatprep.subr.mxu0 0.0
      %1771 = vmatpush1.msra.mxu0 0.0
      %1772 = vmatprep.subr.mxu0 0.0
      %1773 = vmatpush1.msra.mxu0 0.0
      %1774 = vmatprep.subr.mxu0 0.0
      %1775 = vmatpush1.msra.mxu0 0.0
      %1776 = vmatprep.subr.mxu0 0.0
      %1777 = vmatpush1.msra.mxu0 0.0
      %1778 = vmatprep.subr.mxu0 0.0
      %1779 = vmatpush1.msra.mxu0 0.0
      %1780 = vmatprep.subr.mxu0 0.0
      %1781 = vmatpush1.msra.mxu0 0.0
      %1782 = vmatprep.subr.mxu0 0.0
      %1783 = vmatpush1.msra.mxu0 0.0
      %1784 = vmatprep.subr.mxu0 0.0
      %1785 = vmatpush1.msra.mxu0 0.0
      %1786 = vmatprep.subr.mxu0 0.0
      %1787 = vmatpush1.msra.mxu0 0.0
      %1788 = vmatprep.subr.mxu0 0.0
      %1789 = vmatpush1.msra.mxu0 0.0
      %1790 = vmatprep.subr.mxu0 0.0
      %1791 = vmatpush1.msra.mxu0 0.0
      %1792 = vmatprep.subr.mxu0 0.0
      %1793 = vmatpush1.msra.mxu0 0.0
      %1794 = vmatprep.subr.mxu0 0.0
      %1795 = vmatpush1.msra.mxu0 0.0
      %1796 = vmatprep.subr.mxu0 0.0
      %1797 = vmatpush1.msra.mxu0 0.0
      %1798 = vmatprep.subr.mxu0 0.0
      %1799 = vmatpush1.msra.mxu0 0.0
      %1800 = vmatprep.subr.mxu0 0.0
      %1801 = vmatpush1.msra.mxu0 0.0
      %1802 = vmatprep.subr.mxu0 0.0
      %1803 = vmatpush1.msra.mxu0 0.0
      %1804 = vmatprep.subr.mxu0 0.0
      %1805 = vmatpush1.msra.mxu0 0.0
      %1806 = vmatprep.subr.mxu0 0.0
      %1807 = vmatpush1.msra.mxu0 0.0
      %1808 = vmatprep.subr.mxu0 0.0
      %1809 = vmatpush1.msra.mxu0 0.0
      %1810 = vmatprep.subr.mxu0 0.0
      %1811 = vmatpush1.msra.mxu0 0.0
      %1812 = vmatprep.subr.mxu0 0.0
      %1813 = vmatpush1.msra.mxu0 0.0
      %1814 = vmatprep.mubr.f32.mxu0 0.0
      %v1815 = vand.u32 %v1660, 4294901760
      %1816 = vmatmul.mubr.f32.gmra.mrb[0].mxu0 %v1815
      %v1817 = vpop.f32.mrb[0].mxu0
      %v1818 = vadd.f32 %v1736, %v1817
      %v1819 = vpop.f32.mrb[0].mxu0
      %v1820 = vadd.f32 %v1738, %v1819
      %1821 = vdwg.mxu0
      %v1822 = vand.u32 %v302, 4294901760
      %v1823 = vsub.f32 %v302, %v1822
      %1824 = vmatprep.subr.mxu0 %v1823
      %v1825 = vand.u32 %v301, 4294901760
      %v1826 = vsub.f32 %v301, %v1825
      %1827 = vmatpush1.msra.mxu0 %v1826
      %1828 = vmatprep.subr.mxu0 0.0
      %1829 = vmatpush1.msra.mxu0 0.0
      %1830 = vmatprep.subr.mxu0 0.0
      %1831 = vmatpush1.msra.mxu0 0.0
      %1832 = vmatprep.subr.mxu0 0.0
      %1833 = vmatpush1.msra.mxu0 0.0
      %1834 = vmatprep.subr.mxu0 0.0
      %1835 = vmatpush1.msra.mxu0 0.0
      %1836 = vmatprep.subr.mxu0 0.0
      %1837 = vmatpush1.msra.mxu0 0.0
      %1838 = vmatprep.subr.mxu0 0.0
      %1839 = vmatpush1.msra.mxu0 0.0
      %1840 = vmatprep.subr.mxu0 0.0
      %1841 = vmatpush1.msra.mxu0 0.0
      %1842 = vmatprep.subr.mxu0 0.0
      %1843 = vmatpush1.msra.mxu0 0.0
      %1844 = vmatprep.subr.mxu0 0.0
      %1845 = vmatpush1.msra.mxu0 0.0
      %1846 = vmatprep.subr.mxu0 0.0
      %1847 = vmatpush1.msra.mxu0 0.0
      %1848 = vmatprep.subr.mxu0 0.0
      %1849 = vmatpush1.msra.mxu0 0.0
      %1850 = vmatprep.subr.mxu0 0.0
      %1851 = vmatpush1.msra.mxu0 0.0
      %1852 = vmatprep.subr.mxu0 0.0
      %1853 = vmatpush1.msra.mxu0 0.0
      %1854 = vmatprep.subr.mxu0 0.0
      %1855 = vmatpush1.msra.mxu0 0.0
      %1856 = vmatprep.subr.mxu0 0.0
      %1857 = vmatpush1.msra.mxu0 0.0
      %1858 = vmatprep.subr.mxu0 0.0
      %1859 = vmatpush1.msra.mxu0 0.0
      %1860 = vmatprep.subr.mxu0 0.0
      %1861 = vmatpush1.msra.mxu0 0.0
      %1862 = vmatprep.subr.mxu0 0.0
      %1863 = vmatpush1.msra.mxu0 0.0
      %1864 = vmatprep.subr.mxu0 0.0
      %1865 = vmatpush1.msra.mxu0 0.0
      %1866 = vmatprep.subr.mxu0 0.0
      %1867 = vmatpush1.msra.mxu0 0.0
      %1868 = vmatprep.subr.mxu0 0.0
      %1869 = vmatpush1.msra.mxu0 0.0
      %1870 = vmatprep.subr.mxu0 0.0
      %1871 = vmatpush1.msra.mxu0 0.0
      %1872 = vmatprep.subr.mxu0 0.0
      %1873 = vmatpush1.msra.mxu0 0.0
      %1874 = vmatprep.subr.mxu0 0.0
      %1875 = vmatpush1.msra.mxu0 0.0
      %1876 = vmatprep.subr.mxu0 0.0
      %1877 = vmatpush1.msra.mxu0 0.0
      %1878 = vmatprep.subr.mxu0 0.0
      %1879 = vmatpush1.msra.mxu0 0.0
      %1880 = vmatprep.subr.mxu0 0.0
      %1881 = vmatpush1.msra.mxu0 0.0
      %1882 = vmatprep.subr.mxu0 0.0
      %1883 = vmatpush1.msra.mxu0 0.0
      %1884 = vmatprep.subr.mxu0 0.0
      %1885 = vmatpush1.msra.mxu0 0.0
      %1886 = vmatprep.subr.mxu0 0.0
      %1887 = vmatpush1.msra.mxu0 0.0
      %1888 = vmatprep.subr.mxu0 0.0
      %1889 = vmatpush1.msra.mxu0 0.0
      %1890 = vmatprep.mubr.f32.mxu0 0.0
      %v1891 = vand.u32 %v1660, 4294901760
      %v1892 = vsub.f32 %v1660, %v1891
      %1893 = vmatmul.mubr.f32.gmra.mrb[0].mxu0 %v1892
      %v1894 = vpop.f32.mrb[0].mxu0
      %v1895 = vadd.f32 %v1818, %v1894
      %v1896 = vpop.f32.mrb[0].mxu0
      %v1897 = vadd.f32 %v1820, %v1896
      %1898 = vdwg.mxu0
      %v1899 = vand.u32 %v302, 4294901760
      %1900 = vmatprep.subr.mxu0 %v1899
      %v1901 = vand.u32 %v301, 4294901760
      %1902 = vmatpush1.msra.mxu0 %v1901
      %1903 = vmatprep.subr.mxu0 0.0
      %1904 = vmatpush1.msra.mxu0 0.0
      %1905 = vmatprep.subr.mxu0 0.0
      %1906 = vmatpush1.msra.mxu0 0.0
      %1907 = vmatprep.subr.mxu0 0.0
      %1908 = vmatpush1.msra.mxu0 0.0
      %1909 = vmatprep.subr.mxu0 0.0
      %1910 = vmatpush1.msra.mxu0 0.0
      %1911 = vmatprep.subr.mxu0 0.0
      %1912 = vmatpush1.msra.mxu0 0.0
      %1913 = vmatprep.subr.mxu0 0.0
      %1914 = vmatpush1.msra.mxu0 0.0
      %1915 = vmatprep.subr.mxu0 0.0
      %1916 = vmatpush1.msra.mxu0 0.0
      %1917 = vmatprep.subr.mxu0 0.0
      %1918 = vmatpush1.msra.mxu0 0.0
      %1919 = vmatprep.subr.mxu0 0.0
      %1920 = vmatpush1.msra.mxu0 0.0
      %1921 = vmatprep.subr.mxu0 0.0
      %1922 = vmatpush1.msra.mxu0 0.0
      %1923 = vmatprep.subr.mxu0 0.0
      %1924 = vmatpush1.msra.mxu0 0.0
      %1925 = vmatprep.subr.mxu0 0.0
      %1926 = vmatpush1.msra.mxu0 0.0
      %1927 = vmatprep.subr.mxu0 0.0
      %1928 = vmatpush1.msra.mxu0 0.0
      %1929 = vmatprep.subr.mxu0 0.0
      %1930 = vmatpush1.msra.mxu0 0.0
      %1931 = vmatprep.subr.mxu0 0.0
      %1932 = vmatpush1.msra.mxu0 0.0
      %1933 = vmatprep.subr.mxu0 0.0
      %1934 = vmatpush1.msra.mxu0 0.0
      %1935 = vmatprep.subr.mxu0 0.0
      %1936 = vmatpush1.msra.mxu0 0.0
      %1937 = vmatprep.subr.mxu0 0.0
      %1938 = vmatpush1.msra.mxu0 0.0
      %1939 = vmatprep.subr.mxu0 0.0
      %1940 = vmatpush1.msra.mxu0 0.0
      %1941 = vmatprep.subr.mxu0 0.0
      %1942 = vmatpush1.msra.mxu0 0.0
      %1943 = vmatprep.subr.mxu0 0.0
      %1944 = vmatpush1.msra.mxu0 0.0
      %1945 = vmatprep.subr.mxu0 0.0
      %1946 = vmatpush1.msra.mxu0 0.0
      %1947 = vmatprep.subr.mxu0 0.0
      %1948 = vmatpush1.msra.mxu0 0.0
      %1949 = vmatprep.subr.mxu0 0.0
      %1950 = vmatpush1.msra.mxu0 0.0
      %1951 = vmatprep.subr.mxu0 0.0
      %1952 = vmatpush1.msra.mxu0 0.0
      %1953 = vmatprep.subr.mxu0 0.0
      %1954 = vmatpush1.msra.mxu0 0.0
      %1955 = vmatprep.subr.mxu0 0.0
      %1956 = vmatpush1.msra.mxu0 0.0
      %1957 = vmatprep.subr.mxu0 0.0
      %1958 = vmatpush1.msra.mxu0 0.0
      %1959 = vmatprep.subr.mxu0 0.0
      %1960 = vmatpush1.msra.mxu0 0.0
      %1961 = vmatprep.subr.mxu0 0.0
      %1962 = vmatpush1.msra.mxu0 0.0
      %1963 = vmatprep.subr.mxu0 0.0
      %1964 = vmatpush1.msra.mxu0 0.0
      %1965 = vmatprep.mubr.f32.mxu0 0.0
      %v1966 = vand.u32 %v1660, 4294901760
      %v1967 = vsub.f32 %v1660, %v1966
      %v1968 = vand.u32 %v1967, 4294901760
      %1969 = vmatmul.mubr.f32.gmra.mrb[0].mxu0 %v1968
      %v1970 = vpop.f32.mrb[0].mxu0
      %v1971 = vadd.f32 %v1895, %v1970
      %v1972 = vpop.f32.mrb[0].mxu0
      %v1973 = vadd.f32 %v1897, %v1972
      %1974 = vdwg.mxu0
      %v1975 = vand.u32 %v302, 4294901760
      %v1976 = vsub.f32 %v302, %v1975
      %v1977 = vand.u32 %v1976, 4294901760
      %1978 = vmatprep.subr.mxu0 %v1977
      %v1979 = vand.u32 %v301, 4294901760
      %v1980 = vsub.f32 %v301, %v1979
      %v1981 = vand.u32 %v1980, 4294901760
      %1982 = vmatpush1.msra.mxu0 %v1981
      %1983 = vmatprep.subr.mxu0 0.0
      %1984 = vmatpush1.msra.mxu0 0.0
      %1985 = vmatprep.subr.mxu0 0.0
      %1986 = vmatpush1.msra.mxu0 0.0
      %1987 = vmatprep.subr.mxu0 0.0
      %1988 = vmatpush1.msra.mxu0 0.0
      %1989 = vmatprep.subr.mxu0 0.0
      %1990 = vmatpush1.msra.mxu0 0.0
      %1991 = vmatprep.subr.mxu0 0.0
      %1992 = vmatpush1.msra.mxu0 0.0
      %1993 = vmatprep.subr.mxu0 0.0
      %1994 = vmatpush1.msra.mxu0 0.0
      %1995 = vmatprep.subr.mxu0 0.0
      %1996 = vmatpush1.msra.mxu0 0.0
      %1997 = vmatprep.subr.mxu0 0.0
      %1998 = vmatpush1.msra.mxu0 0.0
      %1999 = vmatprep.subr.mxu0 0.0
      %2000 = vmatpush1.msra.mxu0 0.0
      %2001 = vmatprep.subr.mxu0 0.0
      %2002 = vmatpush1.msra.mxu0 0.0
      %2003 = vmatprep.subr.mxu0 0.0
      %2004 = vmatpush1.msra.mxu0 0.0
      %2005 = vmatprep.subr.mxu0 0.0
      %2006 = vmatpush1.msra.mxu0 0.0
      %2007 = vmatprep.subr.mxu0 0.0
      %2008 = vmatpush1.msra.mxu0 0.0
      %2009 = vmatprep.subr.mxu0 0.0
      %2010 = vmatpush1.msra.mxu0 0.0
      %2011 = vmatprep.subr.mxu0 0.0
      %2012 = vmatpush1.msra.mxu0 0.0
      %2013 = vmatprep.subr.mxu0 0.0
      %2014 = vmatpush1.msra.mxu0 0.0
      %2015 = vmatprep.subr.mxu0 0.0
      %2016 = vmatpush1.msra.mxu0 0.0
      %2017 = vmatprep.subr.mxu0 0.0
      %2018 = vmatpush1.msra.mxu0 0.0
      %2019 = vmatprep.subr.mxu0 0.0
      %2020 = vmatpush1.msra.mxu0 0.0
      %2021 = vmatprep.subr.mxu0 0.0
      %2022 = vmatpush1.msra.mxu0 0.0
      %2023 = vmatprep.subr.mxu0 0.0
      %2024 = vmatpush1.msra.mxu0 0.0
      %2025 = vmatprep.subr.mxu0 0.0
      %2026 = vmatpush1.msra.mxu0 0.0
      %2027 = vmatprep.subr.mxu0 0.0
      %2028 = vmatpush1.msra.mxu0 0.0
      %2029 = vmatprep.subr.mxu0 0.0
      %2030 = vmatpush1.msra.mxu0 0.0
      %2031 = vmatprep.subr.mxu0 0.0
      %2032 = vmatpush1.msra.mxu0 0.0
      %2033 = vmatprep.subr.mxu0 0.0
      %2034 = vmatpush1.msra.mxu0 0.0
      %2035 = vmatprep.subr.mxu0 0.0
      %2036 = vmatpush1.msra.mxu0 0.0
      %2037 = vmatprep.subr.mxu0 0.0
      %2038 = vmatpush1.msra.mxu0 0.0
      %2039 = vmatprep.subr.mxu0 0.0
      %2040 = vmatpush1.msra.mxu0 0.0
      %2041 = vmatprep.subr.mxu0 0.0
      %2042 = vmatpush1.msra.mxu0 0.0
      %2043 = vmatprep.subr.mxu0 0.0
      %2044 = vmatpush1.msra.mxu0 0.0
      %2045 = vmatprep.mubr.f32.mxu0 0.0
      %v2046 = vand.u32 %v1660, 4294901760
      %2047 = vmatmul.mubr.f32.gmra.mrb[0].mxu0 %v2046
      %v2048 = vpop.f32.mrb[0].mxu0
      %v2049 = vadd.f32 %v1971, %v2048
      %v2050 = vpop.f32.mrb[0].mxu0
      %v2051 = vadd.f32 %v1973, %v2050
      %2052 = vdwg.mxu0
      %v2053 = vand.u32 %v302, 4294901760
      %2054 = vmatprep.subr.mxu0 %v2053
      %v2055 = vand.u32 %v301, 4294901760
      %2056 = vmatpush1.msra.mxu0 %v2055
      %2057 = vmatprep.subr.mxu0 0.0
      %2058 = vmatpush1.msra.mxu0 0.0
      %2059 = vmatprep.subr.mxu0 0.0
      %2060 = vmatpush1.msra.mxu0 0.0
      %2061 = vmatprep.subr.mxu0 0.0
      %2062 = vmatpush1.msra.mxu0 0.0
      %2063 = vmatprep.subr.mxu0 0.0
      %2064 = vmatpush1.msra.mxu0 0.0
      %2065 = vmatprep.subr.mxu0 0.0
      %2066 = vmatpush1.msra.mxu0 0.0
      %2067 = vmatprep.subr.mxu0 0.0
      %2068 = vmatpush1.msra.mxu0 0.0
      %2069 = vmatprep.subr.mxu0 0.0
      %2070 = vmatpush1.msra.mxu0 0.0
      %2071 = vmatprep.subr.mxu0 0.0
      %2072 = vmatpush1.msra.mxu0 0.0
      %2073 = vmatprep.subr.mxu0 0.0
      %2074 = vmatpush1.msra.mxu0 0.0
      %2075 = vmatprep.subr.mxu0 0.0
      %2076 = vmatpush1.msra.mxu0 0.0
      %2077 = vmatprep.subr.mxu0 0.0
      %2078 = vmatpush1.msra.mxu0 0.0
      %2079 = vmatprep.subr.mxu0 0.0
      %2080 = vmatpush1.msra.mxu0 0.0
      %2081 = vmatprep.subr.mxu0 0.0
      %2082 = vmatpush1.msra.mxu0 0.0
      %2083 = vmatprep.subr.mxu0 0.0
      %2084 = vmatpush1.msra.mxu0 0.0
      %2085 = vmatprep.subr.mxu0 0.0
      %2086 = vmatpush1.msra.mxu0 0.0
      %2087 = vmatprep.subr.mxu0 0.0
      %2088 = vmatpush1.msra.mxu0 0.0
      %2089 = vmatprep.subr.mxu0 0.0
      %2090 = vmatpush1.msra.mxu0 0.0
      %2091 = vmatprep.subr.mxu0 0.0
      %2092 = vmatpush1.msra.mxu0 0.0
      %2093 = vmatprep.subr.mxu0 0.0
      %2094 = vmatpush1.msra.mxu0 0.0
      %2095 = vmatprep.subr.mxu0 0.0
      %2096 = vmatpush1.msra.mxu0 0.0
      %2097 = vmatprep.subr.mxu0 0.0
      %2098 = vmatpush1.msra.mxu0 0.0
      %2099 = vmatprep.subr.mxu0 0.0
      %2100 = vmatpush1.msra.mxu0 0.0
      %2101 = vmatprep.subr.mxu0 0.0
      %2102 = vmatpush1.msra.mxu0 0.0
      %2103 = vmatprep.subr.mxu0 0.0
      %2104 = vmatpush1.msra.mxu0 0.0
      %2105 = vmatprep.subr.mxu0 0.0
      %2106 = vmatpush1.msra.mxu0 0.0
      %2107 = vmatprep.subr.mxu0 0.0
      %2108 = vmatpush1.msra.mxu0 0.0
      %2109 = vmatprep.subr.mxu0 0.0
      %2110 = vmatpush1.msra.mxu0 0.0
      %2111 = vmatprep.subr.mxu0 0.0
      %2112 = vmatpush1.msra.mxu0 0.0
      %2113 = vmatprep.subr.mxu0 0.0
      %2114 = vmatpush1.msra.mxu0 0.0
      %2115 = vmatprep.subr.mxu0 0.0
      %2116 = vmatpush1.msra.mxu0 0.0
      %2117 = vmatprep.subr.mxu0 0.0
      %2118 = vmatpush1.msra.mxu0 0.0
      %2119 = vmatprep.mubr.f32.mxu0 0.0
      %v2120 = vand.u32 %v1660, 4294901760
      %2121 = vmatmul.mubr.f32.gmra.mrb[0].mxu0 %v2120
      %v2122 = vpop.f32.mrb[0].mxu0
      %v2123 = vadd.f32 %v2049, %v2122
      %v2124 = vpop.f32.mrb[0].mxu0
      %v2125 = vadd.f32 %v2051, %v2124
      %2126 = vdwg.mxu0
      %2127 = vst [vmem:[%s293] sm:$0xff] %v2123
      %2128 = vst [vmem:[%s293 + $0x8] sm:$0xff] %v2125
      %v2129 = vld [vmem:[#allocation2] sm:$0xff]
      %v2130 = vadd.f32 %v2123, %v2125
      %2131 = vadd.xlane.f32.xlu0 %v2130
      %v2132 = vpop.xlane.xlu0 %2131
      %v2133 = vadd.f32 %v2129, %v2132
      %vm2134 = vcmask 7168
      %2135 = vst.msk [vmem:[#allocation2] sm:$0xff] %vm2134, %v2133
      %v2136 = vld [vmem:[#allocation3] sm:$0xff]
      %v2137 = vmul.f32 %v2123, %v2123
      %v2138 = vmul.f32 %v2125, %v2125
      %v2139 = vadd.f32 %v2137, %v2138
      %2140 = vadd.xlane.f32.xlu0 %v2139
      %v2141 = vpop.xlane.xlu0 %2140
      %v2142 = vadd.f32 %v2136, %v2141
      %2143 = vst.msk [vmem:[#allocation3] sm:$0xff] %vm2134, %v2142
      %p2144 = scmp.eq.s32.totalorder %s19, 1
      // Predicated region
      $region45: #{cam_forward.2} parent=39 // pred_check
        %p2145 = pneg %p2144
      $region46: #{cam_forward.2} parent=39 // pred_check_branch
        %2147 = sbr.rel (%p2145) target = $region48
      $region47: #{cam_forward.2} parent=39 // pred_region
        %v2148 = vld [vmem:[#allocation2] sm:$0xff]
        %v2149 = vrcp.pop 512.0
        %v2150 = vmul.f32 %v2148, %v2149
        %v2151 = vld [vmem:[#allocation3] sm:$0xff]
        %v2152 = vmul.f32 %v2151, %v2149
        %v2153 = vmul.f32 %v2150, %v2150
        %v2154 = vsub.f32 %v2152, %v2153
        %v2155 = vadd.f32 %v2154, 1e-05
        %v2156 = vrsqrt.pop %v2155
        %v2157 = vld [vmem:[%s3] sm:$0xff]
        %v2158 = vmul.f32 %v2157, %v2156
        %2159 = vst.msk [vmem:[%s6] sm:$0xff] %vm2134, %v2158
        %v2160 = vld [vmem:[%s4] sm:$0xff]
        %v2161 = vmul.f32 %v2150, %v2158
        %v2162 = vsub.f32 %v2160, %v2161
        %2163 = vst.msk [vmem:[%s7] sm:$0xff] %vm2134, %v2162
      $region48: #{cam_forward.2} parent=39 // pred_fallthru
        _
      %p2164 = scmp.lt.s32.totalorder %s19, 1
      %s2165 = scalar_select %p2164, %s19, 1
      %s2166 = smul.addr %s2165, 2
      %s2167 = smul.addr %s2166, 8
      %s2168 = scalar_lea.vmem %s5, %s2167
      // Predicated region
      $region49: #{cam_forward.2} parent=39 // pred_check
        %p2169 = pneg %p152
      $region50: #{cam_forward.2} parent=39 // pred_check_branch
        %2171 = sbr.rel (%p2169) target = $region52
      $region51: #{cam_forward.2} parent=39 // pred_region
        _
      $region52: #{cam_forward.2} parent=39 // pred_fallthru
        _
      // Predicated region
      $region53: #{cam_forward.2} parent=39 // pred_check
        %p2172 = pneg %p173
      $region54: #{cam_forward.2} parent=39 // pred_check_branch
        %2174 = sbr.rel (%p2172) target = $region56
      $region55: #{cam_forward.2} parent=39 // pred_region
        _
      $region56: #{cam_forward.2} parent=39 // pred_fallthru
        _
      // Predicated region
      $region57: #{cam_forward.2} parent=39 // pred_check
        %p2175 = pneg %p194
      $region58: #{cam_forward.2} parent=39 // pred_check_branch
        %2177 = sbr.rel (%p2175) target = $region60
      $region59: #{cam_forward.2} parent=39 // pred_region
        _
      $region60: #{cam_forward.2} parent=39 // pred_fallthru
        _
      // Predicated region
      $region61: #{cam_forward.2} parent=39 // pred_check
        %p2178 = pneg %p173
      $region62: #{cam_forward.2} parent=39 // pred_check_branch
        %2180 = sbr.rel (%p2178) target = $region64
      $region63: #{cam_forward.2} parent=39 // pred_region
        _
      $region64: #{cam_forward.2} parent=39 // pred_fallthru
        _
      // Predicated region
      $region65: #{cam_forward.2} parent=39 // pred_check
        %p2181 = pneg %p194
      $region66: #{cam_forward.2} parent=39 // pred_check_branch
        %2183 = sbr.rel (%p2181) target = $region68
      $region67: #{cam_forward.2} parent=39 // pred_region
        _
      $region68: #{cam_forward.2} parent=39 // pred_fallthru
        _
    $region40: #{cam_forward.2} parent=5 // pred_fallthru
      _
    %p2184 = scmp.le.s32.totalorder 2, %s14
    // Predicated region
    $region69: #{cam_forward.2} parent=5 // pred_check
      %p2185 = pneg %p2184
    $region70: #{cam_forward.2} parent=5 // pred_check_branch
      %2187 = sbr.rel (%p2185) target = $region72
    $region71: #{cam_forward.2} parent=5 // pred_region
      %s2188 = ssub.s32 %s14, 2
      // Predicated region
      $region73: #{cam_forward.2} parent=71 // pred_check
        %p2189 = pneg %p158
      $region74: #{cam_forward.2} parent=71 // pred_check_branch
        %2191 = sbr.rel (%p2189) target = $region76
      $region75: #{cam_forward.2} parent=71 // pred_region
        %p2192 = scmp.lt.s32.totalorder %s20, 1
        %s2193 = scalar_select %p2192, %s20, 1
        %s2194 = smul.addr %s2193, 2
        %s2195 = smul.addr %s2194, 8
        %s2196 = scalar_lea.vmem %s5, %s2195
      $region76: #{cam_forward.2} parent=71 // pred_fallthru
        _
    $region72: #{cam_forward.2} parent=5 // pred_fallthru
      _
  $region6: #{cam_forward.2} parent=0 // loop_footer
    %s18 = sadd.s32 1, %s14
  $region7: #{cam_forward.2} parent=0 // loop_footer_branch
    %13 = sbr.rel target = $region3
  $region8: #{cam_forward.2} parent=0 // loop_exit
    _

</llo_original>
